<compile_context>
chip_gen: v7x
topology: tpu7x:2x2x1
jax: 0.10.0
libtpu: 0.0.40
codegen_flags: <defaults>
</compile_context>

<pallas_src>
import functools

import jax
import jax.numpy as jnp
from jax.experimental import pallas as pl
from jax.experimental.pallas import tpu as pltpu

_INV_SQRT2 = 0.7071067811865476
_BN_EPS = 1e-5

# stage-1 output parity classes (row parity ri, col parity rj)
_CLASSES = ((0, 0), (0, 1), (1, 0), (1, 1))


# ------------------------------- tap tables ----------------------------------
def _taps_stage1(qw):
    """(tap k, class, 16-phase index, flat lane offset) for the stage-1 gather.

    Stage-1 output (i, j) = (2a + ri, 2b + rj); tap (kh, kw) reads padded input
    (4a + 2*ri + kh, 4b + 2*rj + kw), i.e. 16-phase (rr, cc) with a block shift
    (dqb, dpb) in {0, 1}^2 -> one contiguous slice of the flattened phase plane
    per (tap, class).
    """
    entries = []
    for cls, (ri, rj) in enumerate(_CLASSES):
        for kh in range(3):
            t = 2 * ri + kh
            rr, dqb = t % 4, t // 4
            for kw in range(3):
                u = 2 * rj + kw
                cc, dpb = u % 4, u // 4
                entries.append((kh * 3 + kw, cls, rr * 4 + cc, dqb * qw + dpb))
    return tuple(entries)


def _taps_stage2(wb2):
    """(phase index, flat lane offset) for each of the 9 stage-2 taps."""
    def split(k):                      # padded coord = 2*block + parity
        return ((0, 0), (1, 0), (0, 1))[k]
    taps = []
    for kh in range(3):
        rp, dr = split(kh)
        for kw in range(3):
            cp, dw = split(kw)
            taps.append((2 * rp + cp, dr * wb2 + dw))
    return tuple(taps)


# ------------------------------ fused kernel ---------------------------------
def _fused_kernel(ph_ref, w1_ref, w2_ref, s1_ref, b1_ref, s2_ref, b2_ref,
                  o_ref, x1_ref, ph2_ref, x2_ref, *,
                  taps1, taps2, cin, c1, qw, wo2, ho2, wb2):
    """Both conv3x3/s2/p1 (+BN, +GELU after stage 1) stages for one image.

    ph_ref  : (1, 16*Cin, Lq)  bf16 16-phase split of the zero-padded input
    w1_ref  : (C1, 9*Cin)      bf16   w2_ref : (C2, 9*C1) bf16
    s*_ref/b*_ref : (C, 1) f32 folded BN scale / shift (incl. conv bias)
    o_ref   : (1, C2, m2)      f32 channel-major output (one junk col per row)
    x1_ref  : (9*Cin, 4*mcls)  bf16 scratch   ph2_ref : (4*C1, Lp2) bf16 scratch
    x2_ref  : (9*C1, m2)       bf16 scratch
    """
    mcls = ho2 * qw
    m2 = ho2 * wb2

    # ---- stage-1 gather: one contiguous slice copy per (tap, parity class) --
    for k, cls, ph_idx, off in taps1:
        x1_ref[k * cin:(k + 1) * cin, cls * mcls:(cls + 1) * mcls] = (
            ph_ref[0, ph_idx * cin:(ph_idx + 1) * cin, off:off + mcls])

    # ---- stage 1: single K=9*Cin MXU dot + folded BN + exact GELU -----------
    y1 = jnp.dot(w1_ref[...], x1_ref[...], preferred_element_type=jnp.float32)
    y1 = y1 * s1_ref[...] + b1_ref[...]
    y1 = 0.5 * y1 * (1.0 + jax.lax.erf(y1 * _INV_SQRT2))
    # junk columns (flat col % qw == wo2) land on stage-2 zero-pad positions;
    # force them to zero before the scatter.
    col = jax.lax.broadcasted_iota(jnp.int32, y1.shape, 1)
    y1 = jnp.where(col % qw == wo2, 0.0, y1).astype(jnp.bfloat16)

    # ---- scatter the 4 parity classes into stage-2's phase layout (VMEM) ----
    ph2_ref[...] = jnp.zeros_like(ph2_ref)
    for cls, (ri, rj) in enumerate(_CLASSES):
        p = 2 * (1 - ri) + (1 - rj)           # stage-2 phase fed by this class
        off0 = ri * wb2 + rj                  # flat offset inside the phase
        ph2_ref[p * c1:(p + 1) * c1, off0:off0 + mcls] = (
            y1[:, cls * mcls:(cls + 1) * mcls])

    # ---- stage-2 gather: one contiguous slice per tap ------------------------
    for k, (p2, off2) in enumerate(taps2):
        x2_ref[k * c1:(k + 1) * c1, :] = ph2_ref[p2 * c1:(p2 + 1) * c1,
                                                 off2:off2 + m2]

    # ---- stage 2: single K=9*C1 MXU dot + folded BN --------------------------
    y2 = jnp.dot(w2_ref[...], x2_ref[...], preferred_element_type=jnp.float32)
    y2 = y2 * s2_ref[...] + b2_ref[...]
    o_ref[0, :, :] = y2.astype(o_ref.dtype)


# ---------------------------------- forward ----------------------------------
def conv_embedding_forward(x_nchw, params):
    n, cin, h, w = x_nchw.shape
    assert h % 4 == 0 and w % 4 == 0, "H and W must be multiples of 4"
    ho2, wo2 = h // 4, w // 4
    qh, qw = ho2 + 2, wo2 + 1          # 16-phase block grid (incl. slack rows)
    hb2, wb2 = ho2 + 2, wo2 + 1        # stage-2 phase grid
    lq, lp2 = qh * qw, hb2 * wb2
    mcls = ho2 * qw
    m1, m2 = 4 * mcls, ho2 * wb2
    c1 = params["wtaps1"].shape[0]
    c2 = params["wtaps2"].shape[0]

    # single XLA pass over the input: conv zero-pad (+ slack zeros), cast to
    # bf16, split into the 16 stride-4 phases, channel-major with the flattened
    # spatial grid on lanes.
    xp = jnp.pad(x_nchw, ((0, 0), (0, 0), (1, 4 * qh - h - 1),
                          (1, 4 * qw - w - 1))).astype(jnp.bfloat16)
    ph = xp.reshape(n, cin, qh, 4, qw, 4).transpose(0, 3, 5, 1, 2, 4)
    ph = ph.reshape(n, 16 * cin, lq)

    kernel = functools.partial(
        _fused_kernel, taps1=_taps_stage1(qw), taps2=_taps_stage2(wb2),
        cin=cin, c1=c1, qw=qw, wo2=wo2, ho2=ho2, wb2=wb2)

    flops = 2 * n * (9 * cin * c1 * m1 + 9 * c1 * c2 * m2)
    bytes_accessed = (ph.size * 2 + (9 * cin * c1 + 9 * c1 * c2) * 2
                      + 4 * (c1 + c2) * 4 + n * c2 * m2 * 4)

    out = pl.pallas_call(
        kernel,
        out_shape=jax.ShapeDtypeStruct((n, c2, m2), jnp.float32),
        grid_spec=pltpu.PrefetchScalarGridSpec(
            num_scalar_prefetch=0,
            grid=(n,),                                 # 1 image per grid step
            in_specs=[
                pl.BlockSpec((1, 16 * cin, lq), lambda i: (i, 0, 0)),
                pl.BlockSpec((c1, 9 * cin), lambda i: (0, 0)),   # resident
                pl.BlockSpec((c2, 9 * c1), lambda i: (0, 0)),    # resident
                pl.BlockSpec((c1, 1), lambda i: (0, 0)),
                pl.BlockSpec((c1, 1), lambda i: (0, 0)),
                pl.BlockSpec((c2, 1), lambda i: (0, 0)),
                pl.BlockSpec((c2, 1), lambda i: (0, 0)),
            ],
            out_specs=pl.BlockSpec((1, c2, m2), lambda i: (i, 0, 0)),
            scratch_shapes=[
                pltpu.VMEM((9 * cin, m1), jnp.bfloat16),   # stage-1 patches
                pltpu.VMEM((4 * c1, lp2), jnp.bfloat16),   # stage-2 phase buf
                pltpu.VMEM((9 * c1, m2), jnp.bfloat16),    # stage-2 patches
            ],
        ),
        compiler_params=pltpu.CompilerParams(
            dimension_semantics=("parallel",)),
        cost_estimate=pl.CostEstimate(
            flops=flops, transcendentals=n * c1 * m1,
            bytes_accessed=bytes_accessed),
    )(ph, params["wtaps1"], params["wtaps2"], params["scale1"],
      params["shift1"], params["scale2"], params["shift2"])

    # already channel-major: drop the junk column, no transpose needed.
    return out.reshape(n, c2, ho2, wb2)[:, :, :, :wo2]


# --------------------------- parameter construction --------------------------
def _init_conv(key, cin, cout):
    kw_, kb_ = jax.random.split(key)
    fan_in = cin * 9
    bound = 1.0 / (fan_in ** 0.5)
    w = jax.random.uniform(kw_, (cout, cin, 3, 3), jnp.float32, -bound, bound)
    b = jax.random.uniform(kb_, (cout,), jnp.float32, -bound, bound)
    return w, b


def _init_bn(key, c):
    k1, k2, k3, k4 = jax.random.split(key, 4)
    gamma = 1.0 + 0.1 * jax.random.normal(k1, (c,), jnp.float32)
    beta = 0.1 * jax.random.normal(k2, (c,), jnp.float32)
    mean = 0.1 * jax.random.normal(k3, (c,), jnp.float32)
    var = 1.0 + 0.5 * jax.random.uniform(k4, (c,), jnp.float32)
    return gamma, beta, mean, var


def _fold(w, b, gamma, beta, mean, var):
    """Flat (Cout, 9*Cin) bf16 weights + folded conv-bias/BN scale & shift."""
    cout, cin_ = w.shape[0], w.shape[1]
    wflat = jnp.transpose(w, (0, 2, 3, 1)).reshape(cout, 9 * cin_)
    scale = gamma / jnp.sqrt(var + _BN_EPS)
    shift = (b - mean) * scale + beta
    return (wflat.astype(jnp.bfloat16),
            scale.reshape(cout, 1), shift.reshape(cout, 1))


def make_params(key, in_channels, out_channels):
    c_half = out_channels // 2
    k1, k2, k3, k4 = jax.random.split(key, 4)
    w1, b1 = _init_conv(k1, in_channels, c_half)
    g1, be1, m1, v1 = _init_bn(k2, c_half)
    w2, b2 = _init_conv(k3, c_half, out_channels)
    g2, be2, m2, v2 = _init_bn(k4, out_channels)
    wt1, scale1, shift1 = _fold(w1, b1, g1, be1, m1, v1)
    wt2, scale2, shift2 = _fold(w2, b2, g2, be2, m2, v2)
    return dict(w1=w1, b1=b1, g1=g1, be1=be1, m1=m1, v1=v1,
                w2=w2, b2=b2, g2=g2, be2=be2, m2=m2, v2=v2,
                wtaps1=wt1, scale1=scale1, shift1=shift1,
                wtaps2=wt2, scale2=scale2, shift2=shift2)


# ------------------------------ pure-JAX reference ---------------------------
# compute_dtype=bf16 mirrors the kernel's operand quantization (accumulation
# stays f32 in both).
def conv_embedding_ref(x_nchw, params, compute_dtype=jnp.float32):
    def q(a):
        return a.astype(compute_dtype).astype(jnp.float32)

    def conv(x, w, b):
        y = jax.lax.conv_general_dilated(
            q(x), q(jnp.transpose(w, (2, 3, 1, 0))), window_strides=(2, 2),
            padding=((1, 1), (1, 1)),
            dimension_numbers=("NHWC", "HWIO", "NHWC"),
            preferred_element_type=jnp.float32)
        return y + b

    def bn(x, gamma, beta, mean, var):
        return (x - mean) / jnp.sqrt(var + _BN_EPS) * gamma + beta

    x = jnp.transpose(x_nchw, (0, 2, 3, 1)).astype(jnp.float32)
    y = conv(x, params["w1"], params["b1"])
    y = bn(y, params["g1"], params["be1"], params["m1"], params["v1"])
    y = 0.5 * y * (1.0 + jax.lax.erf(y * _INV_SQRT2))
    y = q(y)                                    # stage-1 intermediate precision
    y = conv(y, params["w2"], params["b2"])
    y = bn(y, params["g2"], params["be2"], params["m2"], params["v2"])
    return jnp.transpose(y, (0, 3, 1, 2))


if __name__ == "__main__":
    key = jax.random.PRNGKey(0)
    kx, kp = jax.random.split(key)

    N, C_in, H, W = 2, 4, 16, 16
    out_channels = 32
    x = jax.random.normal(kx, (N, C_in, H, W), jnp.float32)
    params = make_params(kp, C_in, out_channels)

    fwd = jax.jit(conv_embedding_forward)
    out = jax.block_until_ready(fwd(x, params))
    assert out.shape == (N, out_channels, H // 4, W // 4), out.shape

    # kernel-math check vs. a reference with matching bf16 operand quantization
    ref_bf16 = jax.block_until_ready(
        conv_embedding_ref(x, params, compute_dtype=jnp.bfloat16))
    assert jnp.allclose(out, ref_bf16, atol=2e-2, rtol=2e-2), (
        float(jnp.max(jnp.abs(out - ref_bf16))))

    # gross-error check vs. the full-f32 reference (loose: bf16 operands)
    ref_f32 = jax.block_until_ready(conv_embedding_ref(x, params))
    assert float(jnp.max(jnp.abs(out - ref_f32))) < 0.25

    print("KERNEL_OK")
</pallas_src>

<mosaic_0001>
module attributes {stable_mosaic.version = 11 : i64} {
  func.func @_fused_kernel(%arg0: i32, %arg1: memref<1x64x30xbf16, #tpu.memory_space<vmem>>, %arg2: memref<16x36xbf16, #tpu.memory_space<vmem>>, %arg3: memref<32x144xbf16, #tpu.memory_space<vmem>>, %arg4: memref<16x1xf32, #tpu.memory_space<vmem>>, %arg5: memref<16x1xf32, #tpu.memory_space<vmem>>, %arg6: memref<32x1xf32, #tpu.memory_space<vmem>>, %arg7: memref<32x1xf32, #tpu.memory_space<vmem>>, %arg8: memref<1x32x20xf32, #tpu.memory_space<vmem>>, %arg9: memref<36x80xbf16, #tpu.memory_space<vmem>>, %arg10: memref<64x30xbf16, #tpu.memory_space<vmem>>, %arg11: memref<144x20xbf16, #tpu.memory_space<vmem>>) attributes {dimension_semantics = [#tpu.dimension_semantics<parallel>], iteration_bounds = array<i64: 2>, scalar_prefetch = 0 : i64, scratch_operands = 3 : i64, tpu.core_type = #tpu.core_type<tc>, window_params = [{transform_indices = @transform_0, window_bounds = array<i64: 1, 64, 30>}, {pipeline_mode = #tpu.pipeline_mode<synchronous>, transform_indices = @transform_1, window_bounds = array<i64: 16, 36>}, {pipeline_mode = #tpu.pipeline_mode<synchronous>, transform_indices = @transform_2, window_bounds = array<i64: 32, 144>}, {pipeline_mode = #tpu.pipeline_mode<synchronous>, transform_indices = @transform_3, window_bounds = array<i64: 16, 1>}, {pipeline_mode = #tpu.pipeline_mode<synchronous>, transform_indices = @transform_4, window_bounds = array<i64: 16, 1>}, {pipeline_mode = #tpu.pipeline_mode<synchronous>, transform_indices = @transform_5, window_bounds = array<i64: 32, 1>}, {pipeline_mode = #tpu.pipeline_mode<synchronous>, transform_indices = @transform_6, window_bounds = array<i64: 32, 1>}, {transform_indices = @transform_7, window_bounds = array<i64: 1, 32, 20>}]} {
    %c0 = arith.constant 0 : index
    %c0_0 = arith.constant 0 : index
    %c0_1 = arith.constant 0 : index
    %0 = vector.load %arg1[%c0, %c0_0, %c0_1] : memref<1x64x30xbf16, #tpu.memory_space<vmem>>, vector<1x4x20xbf16>
    %1 = vector.shape_cast %0 : vector<1x4x20xbf16> to vector<4x20xbf16>
    %c0_2 = arith.constant 0 : index
    %c0_3 = arith.constant 0 : index
    %2 = vector.load %arg9[%c0_2, %c0_3] : memref<36x80xbf16, #tpu.memory_space<vmem>>, vector<4x20xbf16>
    tpu.vector_store %arg9[%c0_2, %c0_3], %1 {strides = array<i32>} : memref<36x80xbf16, #tpu.memory_space<vmem>>, vector<4x20xbf16>,
    %c0_4 = arith.constant 0 : index
    %c4 = arith.constant 4 : index
    %c0_5 = arith.constant 0 : index
    %3 = vector.load %arg1[%c0_4, %c4, %c0_5] : memref<1x64x30xbf16, #tpu.memory_space<vmem>>, vector<1x4x20xbf16>
    %4 = vector.shape_cast %3 : vector<1x4x20xbf16> to vector<4x20xbf16>
    %c4_6 = arith.constant 4 : index
    %c0_7 = arith.constant 0 : index
    %5 = vector.load %arg9[%c4_6, %c0_7] : memref<36x80xbf16, #tpu.memory_space<vmem>>, vector<4x20xbf16>
    tpu.vector_store %arg9[%c4_6, %c0_7], %4 {strides = array<i32>} : memref<36x80xbf16, #tpu.memory_space<vmem>>, vector<4x20xbf16>,
    %c0_8 = arith.constant 0 : index
    %c8 = arith.constant 8 : index
    %c0_9 = arith.constant 0 : index
    %6 = vector.load %arg1[%c0_8, %c8, %c0_9] : memref<1x64x30xbf16, #tpu.memory_space<vmem>>, vector<1x4x20xbf16>
    %7 = vector.shape_cast %6 : vector<1x4x20xbf16> to vector<4x20xbf16>
    %c8_10 = arith.constant 8 : index
    %c0_11 = arith.constant 0 : index
    %8 = vector.load %arg9[%c8_10, %c0_11] : memref<36x80xbf16, #tpu.memory_space<vmem>>, vector<4x20xbf16>
    tpu.vector_store %arg9[%c8_10, %c0_11], %7 {strides = array<i32>} : memref<36x80xbf16, #tpu.memory_space<vmem>>, vector<4x20xbf16>,
    %c0_12 = arith.constant 0 : index
    %c16 = arith.constant 16 : index
    %c0_13 = arith.constant 0 : index
    %9 = vector.load %arg1[%c0_12, %c16, %c0_13] : memref<1x64x30xbf16, #tpu.memory_space<vmem>>, vector<1x4x20xbf16>
    %10 = vector.shape_cast %9 : vector<1x4x20xbf16> to vector<4x20xbf16>
    %c12 = arith.constant 12 : index
    %c0_14 = arith.constant 0 : index
    %11 = vector.load %arg9[%c12, %c0_14] : memref<36x80xbf16, #tpu.memory_space<vmem>>, vector<4x20xbf16>
    tpu.vector_store %arg9[%c12, %c0_14], %10 {strides = array<i32>} : memref<36x80xbf16, #tpu.memory_space<vmem>>, vector<4x20xbf16>,
    %c0_15 = arith.constant 0 : index
    %c20 = arith.constant 20 : index
    %c0_16 = arith.constant 0 : index
    %12 = vector.load %arg1[%c0_15, %c20, %c0_16] : memref<1x64x30xbf16, #tpu.memory_space<vmem>>, vector<1x4x20xbf16>
    %13 = vector.shape_cast %12 : vector<1x4x20xbf16> to vector<4x20xbf16>
    %c16_17 = arith.constant 16 : index
    %c0_18 = arith.constant 0 : index
    %14 = vector.load %arg9[%c16_17, %c0_18] : memref<36x80xbf16, #tpu.memory_space<vmem>>, vector<4x20xbf16>
    tpu.vector_store %arg9[%c16_17, %c0_18], %13 {strides = array<i32>} : memref<36x80xbf16, #tpu.memory_space<vmem>>, vector<4x20xbf16>,
    %c0_19 = arith.constant 0 : index
    %c24 = arith.constant 24 : index
    %c0_20 = arith.constant 0 : index
    %15 = vector.load %arg1[%c0_19, %c24, %c0_20] : memref<1x64x30xbf16, #tpu.memory_space<vmem>>, vector<1x4x20xbf16>
    %16 = vector.shape_cast %15 : vector<1x4x20xbf16> to vector<4x20xbf16>
    %c20_21 = arith.constant 20 : index
    %c0_22 = arith.constant 0 : index
    %17 = vector.load %arg9[%c20_21, %c0_22] : memref<36x80xbf16, #tpu.memory_space<vmem>>, vector<4x20xbf16>
    tpu.vector_store %arg9[%c20_21, %c0_22], %16 {strides = array<i32>} : memref<36x80xbf16, #tpu.memory_space<vmem>>, vector<4x20xbf16>,
    %c0_23 = arith.constant 0 : index
    %c32 = arith.constant 32 : index
    %c0_24 = arith.constant 0 : index
    %18 = vector.load %arg1[%c0_23, %c32, %c0_24] : memref<1x64x30xbf16, #tpu.memory_space<vmem>>, vector<1x4x20xbf16>
    %19 = vector.shape_cast %18 : vector<1x4x20xbf16> to vector<4x20xbf16>
    %c24_25 = arith.constant 24 : index
    %c0_26 = arith.constant 0 : index
    %20 = vector.load %arg9[%c24_25, %c0_26] : memref<36x80xbf16, #tpu.memory_space<vmem>>, vector<4x20xbf16>
    tpu.vector_store %arg9[%c24_25, %c0_26], %19 {strides = array<i32>} : memref<36x80xbf16, #tpu.memory_space<vmem>>, vector<4x20xbf16>,
    %c0_27 = arith.constant 0 : index
    %c36 = arith.constant 36 : index
    %c0_28 = arith.constant 0 : index
    %21 = vector.load %arg1[%c0_27, %c36, %c0_28] : memref<1x64x30xbf16, #tpu.memory_space<vmem>>, vector<1x4x20xbf16>
    %22 = vector.shape_cast %21 : vector<1x4x20xbf16> to vector<4x20xbf16>
    %c28 = arith.constant 28 : index
    %c0_29 = arith.constant 0 : index
    %23 = vector.load %arg9[%c28, %c0_29] : memref<36x80xbf16, #tpu.memory_space<vmem>>, vector<4x20xbf16>
    tpu.vector_store %arg9[%c28, %c0_29], %22 {strides = array<i32>} : memref<36x80xbf16, #tpu.memory_space<vmem>>, vector<4x20xbf16>,
    %c0_30 = arith.constant 0 : index
    %c40 = arith.constant 40 : index
    %c0_31 = arith.constant 0 : index
    %24 = vector.load %arg1[%c0_30, %c40, %c0_31] : memref<1x64x30xbf16, #tpu.memory_space<vmem>>, vector<1x4x20xbf16>
    %25 = vector.shape_cast %24 : vector<1x4x20xbf16> to vector<4x20xbf16>
    %c32_32 = arith.constant 32 : index
    %c0_33 = arith.constant 0 : index
    %26 = vector.load %arg9[%c32_32, %c0_33] : memref<36x80xbf16, #tpu.memory_space<vmem>>, vector<4x20xbf16>
    tpu.vector_store %arg9[%c32_32, %c0_33], %25 {strides = array<i32>} : memref<36x80xbf16, #tpu.memory_space<vmem>>, vector<4x20xbf16>,
    %c0_34 = arith.constant 0 : index
    %c8_35 = arith.constant 8 : index
    %c0_36 = arith.constant 0 : index
    %27 = vector.load %arg1[%c0_34, %c8_35, %c0_36] : memref<1x64x30xbf16, #tpu.memory_space<vmem>>, vector<1x4x20xbf16>
    %28 = vector.shape_cast %27 : vector<1x4x20xbf16> to vector<4x20xbf16>
    %c0_37 = arith.constant 0 : index
    %c20_38 = arith.constant 20 : index
    %29 = vector.load %arg9[%c0_37, %c20_38] : memref<36x80xbf16, #tpu.memory_space<vmem>>, vector<4x20xbf16>
    tpu.vector_store %arg9[%c0_37, %c20_38], %28 {strides = array<i32>} : memref<36x80xbf16, #tpu.memory_space<vmem>>, vector<4x20xbf16>,
    %c0_39 = arith.constant 0 : index
    %c12_40 = arith.constant 12 : index
    %c0_41 = arith.constant 0 : index
    %30 = vector.load %arg1[%c0_39, %c12_40, %c0_41] : memref<1x64x30xbf16, #tpu.memory_space<vmem>>, vector<1x4x20xbf16>
    %31 = vector.shape_cast %30 : vector<1x4x20xbf16> to vector<4x20xbf16>
    %c4_42 = arith.constant 4 : index
    %c20_43 = arith.constant 20 : index
    %32 = vector.load %arg9[%c4_42, %c20_43] : memref<36x80xbf16, #tpu.memory_space<vmem>>, vector<4x20xbf16>
    tpu.vector_store %arg9[%c4_42, %c20_43], %31 {strides = array<i32>} : memref<36x80xbf16, #tpu.memory_space<vmem>>, vector<4x20xbf16>,
    %c0_44 = arith.constant 0 : index
    %c0_45 = arith.constant 0 : index
    %c1 = arith.constant 1 : index
    %33 = vector.load %arg1[%c0_44, %c0_45, %c1] : memref<1x64x30xbf16, #tpu.memory_space<vmem>>, vector<1x4x20xbf16>
    %34 = vector.shape_cast %33 : vector<1x4x20xbf16> to vector<4x20xbf16>
    %c8_46 = arith.constant 8 : index
    %c20_47 = arith.constant 20 : index
    %35 = vector.load %arg9[%c8_46, %c20_47] : memref<36x80xbf16, #tpu.memory_space<vmem>>, vector<4x20xbf16>
    tpu.vector_store %arg9[%c8_46, %c20_47], %34 {strides = array<i32>} : memref<36x80xbf16, #tpu.memory_space<vmem>>, vector<4x20xbf16>,
    %c0_48 = arith.constant 0 : index
    %c24_49 = arith.constant 24 : index
    %c0_50 = arith.constant 0 : index
    %36 = vector.load %arg1[%c0_48, %c24_49, %c0_50] : memref<1x64x30xbf16, #tpu.memory_space<vmem>>, vector<1x4x20xbf16>
    %37 = vector.shape_cast %36 : vector<1x4x20xbf16> to vector<4x20xbf16>
    %c12_51 = arith.constant 12 : index
    %c20_52 = arith.constant 20 : index
    %38 = vector.load %arg9[%c12_51, %c20_52] : memref<36x80xbf16, #tpu.memory_space<vmem>>, vector<4x20xbf16>
    tpu.vector_store %arg9[%c12_51, %c20_52], %37 {strides = array<i32>} : memref<36x80xbf16, #tpu.memory_space<vmem>>, vector<4x20xbf16>,
    %c0_53 = arith.constant 0 : index
    %c28_54 = arith.constant 28 : index
    %c0_55 = arith.constant 0 : index
    %39 = vector.load %arg1[%c0_53, %c28_54, %c0_55] : memref<1x64x30xbf16, #tpu.memory_space<vmem>>, vector<1x4x20xbf16>
    %40 = vector.shape_cast %39 : vector<1x4x20xbf16> to vector<4x20xbf16>
    %c16_56 = arith.constant 16 : index
    %c20_57 = arith.constant 20 : index
    %41 = vector.load %arg9[%c16_56, %c20_57] : memref<36x80xbf16, #tpu.memory_space<vmem>>, vector<4x20xbf16>
    tpu.vector_store %arg9[%c16_56, %c20_57], %40 {strides = array<i32>} : memref<36x80xbf16, #tpu.memory_space<vmem>>, vector<4x20xbf16>,
    %c0_58 = arith.constant 0 : index
    %c16_59 = arith.constant 16 : index
    %c1_60 = arith.constant 1 : index
    %42 = vector.load %arg1[%c0_58, %c16_59, %c1_60] : memref<1x64x30xbf16, #tpu.memory_space<vmem>>, vector<1x4x20xbf16>
    %43 = vector.shape_cast %42 : vector<1x4x20xbf16> to vector<4x20xbf16>
    %c20_61 = arith.constant 20 : index
    %c20_62 = arith.constant 20 : index
    %44 = vector.load %arg9[%c20_61, %c20_62] : memref<36x80xbf16, #tpu.memory_space<vmem>>, vector<4x20xbf16>
    tpu.vector_store %arg9[%c20_61, %c20_62], %43 {strides = array<i32>} : memref<36x80xbf16, #tpu.memory_space<vmem>>, vector<4x20xbf16>,
    %c0_63 = arith.constant 0 : index
    %c40_64 = arith.constant 40 : index
    %c0_65 = arith.constant 0 : index
    %45 = vector.load %arg1[%c0_63, %c40_64, %c0_65] : memref<1x64x30xbf16, #tpu.memory_space<vmem>>, vector<1x4x20xbf16>
    %46 = vector.shape_cast %45 : vector<1x4x20xbf16> to vector<4x20xbf16>
    %c24_66 = arith.constant 24 : index
    %c20_67 = arith.constant 20 : index
    %47 = vector.load %arg9[%c24_66, %c20_67] : memref<36x80xbf16, #tpu.memory_space<vmem>>, vector<4x20xbf16>
    tpu.vector_store %arg9[%c24_66, %c20_67], %46 {strides = array<i32>} : memref<36x80xbf16, #tpu.memory_space<vmem>>, vector<4x20xbf16>,
    %c0_68 = arith.constant 0 : index
    %c44 = arith.constant 44 : index
    %c0_69 = arith.constant 0 : index
    %48 = vector.load %arg1[%c0_68, %c44, %c0_69] : memref<1x64x30xbf16, #tpu.memory_space<vmem>>, vector<1x4x20xbf16>
    %49 = vector.shape_cast %48 : vector<1x4x20xbf16> to vector<4x20xbf16>
    %c28_70 = arith.constant 28 : index
    %c20_71 = arith.constant 20 : index
    %50 = vector.load %arg9[%c28_70, %c20_71] : memref<36x80xbf16, #tpu.memory_space<vmem>>, vector<4x20xbf16>
    tpu.vector_store %arg9[%c28_70, %c20_71], %49 {strides = array<i32>} : memref<36x80xbf16, #tpu.memory_space<vmem>>, vector<4x20xbf16>,
    %c0_72 = arith.constant 0 : index
    %c32_73 = arith.constant 32 : index
    %c1_74 = arith.constant 1 : index
    %51 = vector.load %arg1[%c0_72, %c32_73, %c1_74] : memref<1x64x30xbf16, #tpu.memory_space<vmem>>, vector<1x4x20xbf16>
    %52 = vector.shape_cast %51 : vector<1x4x20xbf16> to vector<4x20xbf16>
    %c32_75 = arith.constant 32 : index
    %c20_76 = arith.constant 20 : index
    %53 = vector.load %arg9[%c32_75, %c20_76] : memref<36x80xbf16, #tpu.memory_space<vmem>>, vector<4x20xbf16>
    tpu.vector_store %arg9[%c32_75, %c20_76], %52 {strides = array<i32>} : memref<36x80xbf16, #tpu.memory_space<vmem>>, vector<4x20xbf16>,
    %c0_77 = arith.constant 0 : index
    %c32_78 = arith.constant 32 : index
    %c0_79 = arith.constant 0 : index
    %54 = vector.load %arg1[%c0_77, %c32_78, %c0_79] : memref<1x64x30xbf16, #tpu.memory_space<vmem>>, vector<1x4x20xbf16>
    %55 = vector.shape_cast %54 : vector<1x4x20xbf16> to vector<4x20xbf16>
    %c0_80 = arith.constant 0 : index
    %c40_81 = arith.constant 40 : index
    %56 = vector.load %arg9[%c0_80, %c40_81] : memref<36x80xbf16, #tpu.memory_space<vmem>>, vector<4x20xbf16>
    tpu.vector_store %arg9[%c0_80, %c40_81], %55 {strides = array<i32>} : memref<36x80xbf16, #tpu.memory_space<vmem>>, vector<4x20xbf16>,
    %c0_82 = arith.constant 0 : index
    %c36_83 = arith.constant 36 : index
    %c0_84 = arith.constant 0 : index
    %57 = vector.load %arg1[%c0_82, %c36_83, %c0_84] : memref<1x64x30xbf16, #tpu.memory_space<vmem>>, vector<1x4x20xbf16>
    %58 = vector.shape_cast %57 : vector<1x4x20xbf16> to vector<4x20xbf16>
    %c4_85 = arith.constant 4 : index
    %c40_86 = arith.constant 40 : index
    %59 = vector.load %arg9[%c4_85, %c40_86] : memref<36x80xbf16, #tpu.memory_space<vmem>>, vector<4x20xbf16>
    tpu.vector_store %arg9[%c4_85, %c40_86], %58 {strides = array<i32>} : memref<36x80xbf16, #tpu.memory_space<vmem>>, vector<4x20xbf16>,
    %c0_87 = arith.constant 0 : index
    %c40_88 = arith.constant 40 : index
    %c0_89 = arith.constant 0 : index
    %60 = vector.load %arg1[%c0_87, %c40_88, %c0_89] : memref<1x64x30xbf16, #tpu.memory_space<vmem>>, vector<1x4x20xbf16>
    %61 = vector.shape_cast %60 : vector<1x4x20xbf16> to vector<4x20xbf16>
    %c8_90 = arith.constant 8 : index
    %c40_91 = arith.constant 40 : index
    %62 = vector.load %arg9[%c8_90, %c40_91] : memref<36x80xbf16, #tpu.memory_space<vmem>>, vector<4x20xbf16>
    tpu.vector_store %arg9[%c8_90, %c40_91], %61 {strides = array<i32>} : memref<36x80xbf16, #tpu.memory_space<vmem>>, vector<4x20xbf16>,
    %c0_92 = arith.constant 0 : index
    %c48 = arith.constant 48 : index
    %c0_93 = arith.constant 0 : index
    %63 = vector.load %arg1[%c0_92, %c48, %c0_93] : memref<1x64x30xbf16, #tpu.memory_space<vmem>>, vector<1x4x20xbf16>
    %64 = vector.shape_cast %63 : vector<1x4x20xbf16> to vector<4x20xbf16>
    %c12_94 = arith.constant 12 : index
    %c40_95 = arith.constant 40 : index
    %65 = vector.load %arg9[%c12_94, %c40_95] : memref<36x80xbf16, #tpu.memory_space<vmem>>, vector<4x20xbf16>
    tpu.vector_store %arg9[%c12_94, %c40_95], %64 {strides = array<i32>} : memref<36x80xbf16, #tpu.memory_space<vmem>>, vector<4x20xbf16>,
    %c0_96 = arith.constant 0 : index
    %c52 = arith.constant 52 : index
    %c0_97 = arith.constant 0 : index
    %66 = vector.load %arg1[%c0_96, %c52, %c0_97] : memref<1x64x30xbf16, #tpu.memory_space<vmem>>, vector<1x4x20xbf16>
    %67 = vector.shape_cast %66 : vector<1x4x20xbf16> to vector<4x20xbf16>
    %c16_98 = arith.constant 16 : index
    %c40_99 = arith.constant 40 : index
    %68 = vector.load %arg9[%c16_98, %c40_99] : memref<36x80xbf16, #tpu.memory_space<vmem>>, vector<4x20xbf16>
    tpu.vector_store %arg9[%c16_98, %c40_99], %67 {strides = array<i32>} : memref<36x80xbf16, #tpu.memory_space<vmem>>, vector<4x20xbf16>,
    %c0_100 = arith.constant 0 : index
    %c56 = arith.constant 56 : index
    %c0_101 = arith.constant 0 : index
    %69 = vector.load %arg1[%c0_100, %c56, %c0_101] : memref<1x64x30xbf16, #tpu.memory_space<vmem>>, vector<1x4x20xbf16>
    %70 = vector.shape_cast %69 : vector<1x4x20xbf16> to vector<4x20xbf16>
    %c20_102 = arith.constant 20 : index
    %c40_103 = arith.constant 40 : index
    %71 = vector.load %arg9[%c20_102, %c40_103] : memref<36x80xbf16, #tpu.memory_space<vmem>>, vector<4x20xbf16>
    tpu.vector_store %arg9[%c20_102, %c40_103], %70 {strides = array<i32>} : memref<36x80xbf16, #tpu.memory_space<vmem>>, vector<4x20xbf16>,
    %c0_104 = arith.constant 0 : index
    %c0_105 = arith.constant 0 : index
    %c5 = arith.constant 5 : index
    %72 = vector.load %arg1[%c0_104, %c0_105, %c5] : memref<1x64x30xbf16, #tpu.memory_space<vmem>>, vector<1x4x20xbf16>
    %73 = vector.shape_cast %72 : vector<1x4x20xbf16> to vector<4x20xbf16>
    %c24_106 = arith.constant 24 : index
    %c40_107 = arith.constant 40 : index
    %74 = vector.load %arg9[%c24_106, %c40_107] : memref<36x80xbf16, #tpu.memory_space<vmem>>, vector<4x20xbf16>
    tpu.vector_store %arg9[%c24_106, %c40_107], %73 {strides = array<i32>} : memref<36x80xbf16, #tpu.memory_space<vmem>>, vector<4x20xbf16>,
    %c0_108 = arith.constant 0 : index
    %c4_109 = arith.constant 4 : index
    %c5_110 = arith.constant 5 : index
    %75 = vector.load %arg1[%c0_108, %c4_109, %c5_110] : memref<1x64x30xbf16, #tpu.memory_space<vmem>>, vector<1x4x20xbf16>
    %76 = vector.shape_cast %75 : vector<1x4x20xbf16> to vector<4x20xbf16>
    %c28_111 = arith.constant 28 : index
    %c40_112 = arith.constant 40 : index
    %77 = vector.load %arg9[%c28_111, %c40_112] : memref<36x80xbf16, #tpu.memory_space<vmem>>, vector<4x20xbf16>
    tpu.vector_store %arg9[%c28_111, %c40_112], %76 {strides = array<i32>} : memref<36x80xbf16, #tpu.memory_space<vmem>>, vector<4x20xbf16>,
    %c0_113 = arith.constant 0 : index
    %c8_114 = arith.constant 8 : index
    %c5_115 = arith.constant 5 : index
    %78 = vector.load %arg1[%c0_113, %c8_114, %c5_115] : memref<1x64x30xbf16, #tpu.memory_space<vmem>>, vector<1x4x20xbf16>
    %79 = vector.shape_cast %78 : vector<1x4x20xbf16> to vector<4x20xbf16>
    %c32_116 = arith.constant 32 : index
    %c40_117 = arith.constant 40 : index
    %80 = vector.load %arg9[%c32_116, %c40_117] : memref<36x80xbf16, #tpu.memory_space<vmem>>, vector<4x20xbf16>
    tpu.vector_store %arg9[%c32_116, %c40_117], %79 {strides = array<i32>} : memref<36x80xbf16, #tpu.memory_space<vmem>>, vector<4x20xbf16>,
    %c0_118 = arith.constant 0 : index
    %c40_119 = arith.constant 40 : index
    %c0_120 = arith.constant 0 : index
    %81 = vector.load %arg1[%c0_118, %c40_119, %c0_120] : memref<1x64x30xbf16, #tpu.memory_space<vmem>>, vector<1x4x20xbf16>
    %82 = vector.shape_cast %81 : vector<1x4x20xbf16> to vector<4x20xbf16>
    %c0_121 = arith.constant 0 : index
    %c60 = arith.constant 60 : index
    %83 = vector.load %arg9[%c0_121, %c60] : memref<36x80xbf16, #tpu.memory_space<vmem>>, vector<4x20xbf16>
    tpu.vector_store %arg9[%c0_121, %c60], %82 {strides = array<i32>} : memref<36x80xbf16, #tpu.memory_space<vmem>>, vector<4x20xbf16>,
    %c0_122 = arith.constant 0 : index
    %c44_123 = arith.constant 44 : index
    %c0_124 = arith.constant 0 : index
    %84 = vector.load %arg1[%c0_122, %c44_123, %c0_124] : memref<1x64x30xbf16, #tpu.memory_space<vmem>>, vector<1x4x20xbf16>
    %85 = vector.shape_cast %84 : vector<1x4x20xbf16> to vector<4x20xbf16>
    %c4_125 = arith.constant 4 : index
    %c60_126 = arith.constant 60 : index
    %86 = vector.load %arg9[%c4_125, %c60_126] : memref<36x80xbf16, #tpu.memory_space<vmem>>, vector<4x20xbf16>
    tpu.vector_store %arg9[%c4_125, %c60_126], %85 {strides = array<i32>} : memref<36x80xbf16, #tpu.memory_space<vmem>>, vector<4x20xbf16>,
    %c0_127 = arith.constant 0 : index
    %c32_128 = arith.constant 32 : index
    %c1_129 = arith.constant 1 : index
    %87 = vector.load %arg1[%c0_127, %c32_128, %c1_129] : memref<1x64x30xbf16, #tpu.memory_space<vmem>>, vector<1x4x20xbf16>
    %88 = vector.shape_cast %87 : vector<1x4x20xbf16> to vector<4x20xbf16>
    %c8_130 = arith.constant 8 : index
    %c60_131 = arith.constant 60 : index
    %89 = vector.load %arg9[%c8_130, %c60_131] : memref<36x80xbf16, #tpu.memory_space<vmem>>, vector<4x20xbf16>
    tpu.vector_store %arg9[%c8_130, %c60_131], %88 {strides = array<i32>} : memref<36x80xbf16, #tpu.memory_space<vmem>>, vector<4x20xbf16>,
    %c0_132 = arith.constant 0 : index
    %c56_133 = arith.constant 56 : index
    %c0_134 = arith.constant 0 : index
    %90 = vector.load %arg1[%c0_132, %c56_133, %c0_134] : memref<1x64x30xbf16, #tpu.memory_space<vmem>>, vector<1x4x20xbf16>
    %91 = vector.shape_cast %90 : vector<1x4x20xbf16> to vector<4x20xbf16>
    %c12_135 = arith.constant 12 : index
    %c60_136 = arith.constant 60 : index
    %92 = vector.load %arg9[%c12_135, %c60_136] : memref<36x80xbf16, #tpu.memory_space<vmem>>, vector<4x20xbf16>
    tpu.vector_store %arg9[%c12_135, %c60_136], %91 {strides = array<i32>} : memref<36x80xbf16, #tpu.memory_space<vmem>>, vector<4x20xbf16>,
    %c0_137 = arith.constant 0 : index
    %c60_138 = arith.constant 60 : index
    %c0_139 = arith.constant 0 : index
    %93 = vector.load %arg1[%c0_137, %c60_138, %c0_139] : memref<1x64x30xbf16, #tpu.memory_space<vmem>>, vector<1x4x20xbf16>
    %94 = vector.shape_cast %93 : vector<1x4x20xbf16> to vector<4x20xbf16>
    %c16_140 = arith.constant 16 : index
    %c60_141 = arith.constant 60 : index
    %95 = vector.load %arg9[%c16_140, %c60_141] : memref<36x80xbf16, #tpu.memory_space<vmem>>, vector<4x20xbf16>
    tpu.vector_store %arg9[%c16_140, %c60_141], %94 {strides = array<i32>} : memref<36x80xbf16, #tpu.memory_space<vmem>>, vector<4x20xbf16>,
    %c0_142 = arith.constant 0 : index
    %c48_143 = arith.constant 48 : index
    %c1_144 = arith.constant 1 : index
    %96 = vector.load %arg1[%c0_142, %c48_143, %c1_144] : memref<1x64x30xbf16, #tpu.memory_space<vmem>>, vector<1x4x20xbf16>
    %97 = vector.shape_cast %96 : vector<1x4x20xbf16> to vector<4x20xbf16>
    %c20_145 = arith.constant 20 : index
    %c60_146 = arith.constant 60 : index
    %98 = vector.load %arg9[%c20_145, %c60_146] : memref<36x80xbf16, #tpu.memory_space<vmem>>, vector<4x20xbf16>
    tpu.vector_store %arg9[%c20_145, %c60_146], %97 {strides = array<i32>} : memref<36x80xbf16, #tpu.memory_space<vmem>>, vector<4x20xbf16>,
    %c0_147 = arith.constant 0 : index
    %c8_148 = arith.constant 8 : index
    %c5_149 = arith.constant 5 : index
    %99 = vector.load %arg1[%c0_147, %c8_148, %c5_149] : memref<1x64x30xbf16, #tpu.memory_space<vmem>>, vector<1x4x20xbf16>
    %100 = vector.shape_cast %99 : vector<1x4x20xbf16> to vector<4x20xbf16>
    %c24_150 = arith.constant 24 : index
    %c60_151 = arith.constant 60 : index
    %101 = vector.load %arg9[%c24_150, %c60_151] : memref<36x80xbf16, #tpu.memory_space<vmem>>, vector<4x20xbf16>
    tpu.vector_store %arg9[%c24_150, %c60_151], %100 {strides = array<i32>} : memref<36x80xbf16, #tpu.memory_space<vmem>>, vector<4x20xbf16>,
    %c0_152 = arith.constant 0 : index
    %c12_153 = arith.constant 12 : index
    %c5_154 = arith.constant 5 : index
    %102 = vector.load %arg1[%c0_152, %c12_153, %c5_154] : memref<1x64x30xbf16, #tpu.memory_space<vmem>>, vector<1x4x20xbf16>
    %103 = vector.shape_cast %102 : vector<1x4x20xbf16> to vector<4x20xbf16>
    %c28_155 = arith.constant 28 : index
    %c60_156 = arith.constant 60 : index
    %104 = vector.load %arg9[%c28_155, %c60_156] : memref<36x80xbf16, #tpu.memory_space<vmem>>, vector<4x20xbf16>
    tpu.vector_store %arg9[%c28_155, %c60_156], %103 {strides = array<i32>} : memref<36x80xbf16, #tpu.memory_space<vmem>>, vector<4x20xbf16>,
    %c0_157 = arith.constant 0 : index
    %c0_158 = arith.constant 0 : index
    %c6 = arith.constant 6 : index
    %105 = vector.load %arg1[%c0_157, %c0_158, %c6] : memref<1x64x30xbf16, #tpu.memory_space<vmem>>, vector<1x4x20xbf16>
    %106 = vector.shape_cast %105 : vector<1x4x20xbf16> to vector<4x20xbf16>
    %c32_159 = arith.constant 32 : index
    %c60_160 = arith.constant 60 : index
    %107 = vector.load %arg9[%c32_159, %c60_160] : memref<36x80xbf16, #tpu.memory_space<vmem>>, vector<4x20xbf16>
    tpu.vector_store %arg9[%c32_159, %c60_160], %106 {strides = array<i32>} : memref<36x80xbf16, #tpu.memory_space<vmem>>, vector<4x20xbf16>,
    %c0_161 = arith.constant 0 : index
    %c0_162 = arith.constant 0 : index
    %108 = vector.load %arg2[%c0_161, %c0_162] : memref<16x36xbf16, #tpu.memory_space<vmem>>, vector<16x36xbf16>
    %c0_163 = arith.constant 0 : index
    %c0_164 = arith.constant 0 : index
    %109 = vector.load %arg9[%c0_163, %c0_164] : memref<36x80xbf16, #tpu.memory_space<vmem>>, vector<36x80xbf16>
    %cst = arith.constant dense<0.000000e+00> : vector<16x80xf32>
    %110 = tpu.matmul %108, %109, %cst {dimension_numbers = #tpu.dot_dimension_numbers<[1], [0], [0], [1], [0, 0, 1, 1], [], []>} : vector<16x36xbf16>, vector<36x80xbf16>, vector<16x80xf32> -> vector<16x80xf32>
    %c0_165 = arith.constant 0 : index
    %c0_166 = arith.constant 0 : index
    %111 = vector.load %arg4[%c0_165, %c0_166] : memref<16x1xf32, #tpu.memory_space<vmem>>, vector<16x1xf32>
    %112 = vector.broadcast %111 : vector<16x1xf32> to vector<16x80xf32>
    %113 = arith.mulf %110, %112 : vector<16x80xf32>
    %c0_167 = arith.constant 0 : index
    %c0_168 = arith.constant 0 : index
    %114 = vector.load %arg5[%c0_167, %c0_168] : memref<16x1xf32, #tpu.memory_space<vmem>>, vector<16x1xf32>
    %115 = vector.broadcast %114 : vector<16x1xf32> to vector<16x80xf32>
    %116 = arith.addf %113, %115 : vector<16x80xf32>
    %cst_169 = arith.constant 5.000000e-01 : f32
    %117 = vector.broadcast %cst_169 : f32 to vector<16x80xf32>
    %118 = arith.mulf %117, %116 : vector<16x80xf32>
    %cst_170 = arith.constant 0.707106769 : f32
    %119 = vector.broadcast %cst_170 : f32 to vector<16x80xf32>
    %120 = arith.mulf %116, %119 : vector<16x80xf32>
    %121 = math.erf %120 : vector<16x80xf32>
    %cst_171 = arith.constant 1.000000e+00 : f32
    %122 = vector.broadcast %cst_171 : f32 to vector<16x80xf32>
    %123 = arith.addf %122, %121 : vector<16x80xf32>
    %124 = arith.mulf %118, %123 : vector<16x80xf32>
    %125 = tpu.iota {dimensions = array<i32: 1>} : vector<16x80xi32>
    %c5_i32 = arith.constant 5 : i32
    %c0_i32 = arith.constant 0 : i32
    %126 = arith.cmpi eq, %c5_i32, %c0_i32 : i32
    %c1_i32 = arith.constant 1 : i32
    %127 = arith.select %126, %c1_i32, %c5_i32 : i32
    %128 = vector.broadcast %127 : i32 to vector<16x80xi32>
    %129 = arith.remsi %125, %128 : vector<16x80xi32>
    %c0_i32_172 = arith.constant 0 : i32
    %130 = vector.broadcast %c0_i32_172 : i32 to vector<16x80xi32>
    %131 = arith.cmpi ne, %129, %130 : vector<16x80xi32>
    %c0_i32_173 = arith.constant 0 : i32
    %132 = vector.broadcast %c0_i32_173 : i32 to vector<16x80xi32>
    %133 = arith.cmpi slt, %129, %132 : vector<16x80xi32>
    %c0_i32_174 = arith.constant 0 : i32
    %134 = arith.cmpi slt, %127, %c0_i32_174 : i32
    %135 = vector.broadcast %134 : i1 to vector<16x80xi1>
    %136 = vector.broadcast %135 : vector<16x80xi1> to vector<16x80xi1>
    %137 = arith.xori %133, %136 : vector<16x80xi1>
    %138 = arith.andi %137, %131 : vector<16x80xi1>
    %139 = vector.broadcast %127 : i32 to vector<16x80xi32>
    %140 = arith.addi %129, %139 : vector<16x80xi32>
    %141 = arith.select %138, %140, %129 : vector<16x80xi1>, vector<16x80xi32>
    %c4_i32 = arith.constant 4 : i32
    %142 = vector.broadcast %c4_i32 : i32 to vector<16x80xi32>
    %143 = arith.cmpi eq, %141, %142 : vector<16x80xi32>
    %cst_175 = arith.constant 0.000000e+00 : f32
    %144 = vector.broadcast %cst_175 : f32 to vector<16x80xf32>
    %145 = arith.select %143, %144, %124 : vector<16x80xi1>, vector<16x80xf32>
    %146 = arith.truncf %145 : vector<16x80xf32> to vector<16x80xbf16>
    %cst_176 = arith.constant 0.000000e+00 : bf16
    %147 = vector.broadcast %cst_176 : bf16 to vector<64x30xbf16>
    %c0_177 = arith.constant 0 : index
    %c0_178 = arith.constant 0 : index
    %148 = vector.load %arg10[%c0_177, %c0_178] : memref<64x30xbf16, #tpu.memory_space<vmem>>, vector<64x30xbf16>
    tpu.vector_store %arg10[%c0_177, %c0_178], %147 {strides = array<i32>} : memref<64x30xbf16, #tpu.memory_space<vmem>>, vector<64x30xbf16>,
    %149 = vector.extract_strided_slice %146 {offsets = [0, 0], sizes = [16, 20], strides = [1, 1]} : vector<16x80xbf16> to vector<16x20xbf16>
    %c48_179 = arith.constant 48 : index
    %c0_180 = arith.constant 0 : index
    %150 = vector.load %arg10[%c48_179, %c0_180] : memref<64x30xbf16, #tpu.memory_space<vmem>>, vector<16x20xbf16>
    tpu.vector_store %arg10[%c48_179, %c0_180], %149 {strides = array<i32>} : memref<64x30xbf16, #tpu.memory_space<vmem>>, vector<16x20xbf16>,
    %151 = vector.extract_strided_slice %146 {offsets = [0, 20], sizes = [16, 20], strides = [1, 1]} : vector<16x80xbf16> to vector<16x20xbf16>
    %c32_181 = arith.constant 32 : index
    %c1_182 = arith.constant 1 : index
    %152 = vector.load %arg10[%c32_181, %c1_182] : memref<64x30xbf16, #tpu.memory_space<vmem>>, vector<16x20xbf16>
    tpu.vector_store %arg10[%c32_181, %c1_182], %151 {strides = array<i32>} : memref<64x30xbf16, #tpu.memory_space<vmem>>, vector<16x20xbf16>,
    %153 = vector.extract_strided_slice %146 {offsets = [0, 40], sizes = [16, 20], strides = [1, 1]} : vector<16x80xbf16> to vector<16x20xbf16>
    %c16_183 = arith.constant 16 : index
    %c5_184 = arith.constant 5 : index
    %154 = vector.load %arg10[%c16_183, %c5_184] : memref<64x30xbf16, #tpu.memory_space<vmem>>, vector<16x20xbf16>
    tpu.vector_store %arg10[%c16_183, %c5_184], %153 {strides = array<i32>} : memref<64x30xbf16, #tpu.memory_space<vmem>>, vector<16x20xbf16>,
    %155 = vector.extract_strided_slice %146 {offsets = [0, 60], sizes = [16, 20], strides = [1, 1]} : vector<16x80xbf16> to vector<16x20xbf16>
    %c0_185 = arith.constant 0 : index
    %c6_186 = arith.constant 6 : index
    %156 = vector.load %arg10[%c0_185, %c6_186] : memref<64x30xbf16, #tpu.memory_space<vmem>>, vector<16x20xbf16>
    tpu.vector_store %arg10[%c0_185, %c6_186], %155 {strides = array<i32>} : memref<64x30xbf16, #tpu.memory_space<vmem>>, vector<16x20xbf16>,
    %c0_187 = arith.constant 0 : index
    %c0_188 = arith.constant 0 : index
    %157 = vector.load %arg10[%c0_187, %c0_188] : memref<64x30xbf16, #tpu.memory_space<vmem>>, vector<16x20xbf16>
    %c0_189 = arith.constant 0 : index
    %c0_190 = arith.constant 0 : index
    %158 = vector.load %arg11[%c0_189, %c0_190] : memref<144x20xbf16, #tpu.memory_space<vmem>>, vector<16x20xbf16>
    tpu.vector_store %arg11[%c0_189, %c0_190], %157 {strides = array<i32>} : memref<144x20xbf16, #tpu.memory_space<vmem>>, vector<16x20xbf16>,
    %c16_191 = arith.constant 16 : index
    %c0_192 = arith.constant 0 : index
    %159 = vector.load %arg10[%c16_191, %c0_192] : memref<64x30xbf16, #tpu.memory_space<vmem>>, vector<16x20xbf16>
    %c16_193 = arith.constant 16 : index
    %c0_194 = arith.constant 0 : index
    %160 = vector.load %arg11[%c16_193, %c0_194] : memref<144x20xbf16, #tpu.memory_space<vmem>>, vector<16x20xbf16>
    tpu.vector_store %arg11[%c16_193, %c0_194], %159 {strides = array<i32>} : memref<144x20xbf16, #tpu.memory_space<vmem>>, vector<16x20xbf16>,
    %c0_195 = arith.constant 0 : index
    %c1_196 = arith.constant 1 : index
    %161 = vector.load %arg10[%c0_195, %c1_196] : memref<64x30xbf16, #tpu.memory_space<vmem>>, vector<16x20xbf16>
    %c32_197 = arith.constant 32 : index
    %c0_198 = arith.constant 0 : index
    %162 = vector.load %arg11[%c32_197, %c0_198] : memref<144x20xbf16, #tpu.memory_space<vmem>>, vector<16x20xbf16>
    tpu.vector_store %arg11[%c32_197, %c0_198], %161 {strides = array<i32>} : memref<144x20xbf16, #tpu.memory_space<vmem>>, vector<16x20xbf16>,
    %c32_199 = arith.constant 32 : index
    %c0_200 = arith.constant 0 : index
    %163 = vector.load %arg10[%c32_199, %c0_200] : memref<64x30xbf16, #tpu.memory_space<vmem>>, vector<16x20xbf16>
    %c48_201 = arith.constant 48 : index
    %c0_202 = arith.constant 0 : index
    %164 = vector.load %arg11[%c48_201, %c0_202] : memref<144x20xbf16, #tpu.memory_space<vmem>>, vector<16x20xbf16>
    tpu.vector_store %arg11[%c48_201, %c0_202], %163 {strides = array<i32>} : memref<144x20xbf16, #tpu.memory_space<vmem>>, vector<16x20xbf16>,
    %c48_203 = arith.constant 48 : index
    %c0_204 = arith.constant 0 : index
    %165 = vector.load %arg10[%c48_203, %c0_204] : memref<64x30xbf16, #tpu.memory_space<vmem>>, vector<16x20xbf16>
    %c64 = arith.constant 64 : index
    %c0_205 = arith.constant 0 : index
    %166 = vector.load %arg11[%c64, %c0_205] : memref<144x20xbf16, #tpu.memory_space<vmem>>, vector<16x20xbf16>
    tpu.vector_store %arg11[%c64, %c0_205], %165 {strides = array<i32>} : memref<144x20xbf16, #tpu.memory_space<vmem>>, vector<16x20xbf16>,
    %c32_206 = arith.constant 32 : index
    %c1_207 = arith.constant 1 : index
    %167 = vector.load %arg10[%c32_206, %c1_207] : memref<64x30xbf16, #tpu.memory_space<vmem>>, vector<16x20xbf16>
    %c80 = arith.constant 80 : index
    %c0_208 = arith.constant 0 : index
    %168 = vector.load %arg11[%c80, %c0_208] : memref<144x20xbf16, #tpu.memory_space<vmem>>, vector<16x20xbf16>
    tpu.vector_store %arg11[%c80, %c0_208], %167 {strides = array<i32>} : memref<144x20xbf16, #tpu.memory_space<vmem>>, vector<16x20xbf16>,
    %c0_209 = arith.constant 0 : index
    %c5_210 = arith.constant 5 : index
    %169 = vector.load %arg10[%c0_209, %c5_210] : memref<64x30xbf16, #tpu.memory_space<vmem>>, vector<16x20xbf16>
    %c96 = arith.constant 96 : index
    %c0_211 = arith.constant 0 : index
    %170 = vector.load %arg11[%c96, %c0_211] : memref<144x20xbf16, #tpu.memory_space<vmem>>, vector<16x20xbf16>
    tpu.vector_store %arg11[%c96, %c0_211], %169 {strides = array<i32>} : memref<144x20xbf16, #tpu.memory_space<vmem>>, vector<16x20xbf16>,
    %c16_212 = arith.constant 16 : index
    %c5_213 = arith.constant 5 : index
    %171 = vector.load %arg10[%c16_212, %c5_213] : memref<64x30xbf16, #tpu.memory_space<vmem>>, vector<16x20xbf16>
    %c112 = arith.constant 112 : index
    %c0_214 = arith.constant 0 : index
    %172 = vector.load %arg11[%c112, %c0_214] : memref<144x20xbf16, #tpu.memory_space<vmem>>, vector<16x20xbf16>
    tpu.vector_store %arg11[%c112, %c0_214], %171 {strides = array<i32>} : memref<144x20xbf16, #tpu.memory_space<vmem>>, vector<16x20xbf16>,
    %c0_215 = arith.constant 0 : index
    %c6_216 = arith.constant 6 : index
    %173 = vector.load %arg10[%c0_215, %c6_216] : memref<64x30xbf16, #tpu.memory_space<vmem>>, vector<16x20xbf16>
    %c128 = arith.constant 128 : index
    %c0_217 = arith.constant 0 : index
    %174 = vector.load %arg11[%c128, %c0_217] : memref<144x20xbf16, #tpu.memory_space<vmem>>, vector<16x20xbf16>
    tpu.vector_store %arg11[%c128, %c0_217], %173 {strides = array<i32>} : memref<144x20xbf16, #tpu.memory_space<vmem>>, vector<16x20xbf16>,
    %c0_218 = arith.constant 0 : index
    %c0_219 = arith.constant 0 : index
    %175 = vector.load %arg3[%c0_218, %c0_219] : memref<32x144xbf16, #tpu.memory_space<vmem>>, vector<32x144xbf16>
    %c0_220 = arith.constant 0 : index
    %c0_221 = arith.constant 0 : index
    %176 = vector.load %arg11[%c0_220, %c0_221] : memref<144x20xbf16, #tpu.memory_space<vmem>>, vector<144x20xbf16>
    %cst_222 = arith.constant dense<0.000000e+00> : vector<32x20xf32>
    %177 = tpu.matmul %175, %176, %cst_222 {dimension_numbers = #tpu.dot_dimension_numbers<[1], [0], [0], [1], [0, 0, 1, 1], [], []>} : vector<32x144xbf16>, vector<144x20xbf16>, vector<32x20xf32> -> vector<32x20xf32>
    %c0_223 = arith.constant 0 : index
    %c0_224 = arith.constant 0 : index
    %178 = vector.load %arg6[%c0_223, %c0_224] : memref<32x1xf32, #tpu.memory_space<vmem>>, vector<32x1xf32>
    %179 = vector.broadcast %178 : vector<32x1xf32> to vector<32x20xf32>
    %180 = arith.mulf %177, %179 : vector<32x20xf32>
    %c0_225 = arith.constant 0 : index
    %c0_226 = arith.constant 0 : index
    %181 = vector.load %arg7[%c0_225, %c0_226] : memref<32x1xf32, #tpu.memory_space<vmem>>, vector<32x1xf32>
    %182 = vector.broadcast %181 : vector<32x1xf32> to vector<32x20xf32>
    %183 = arith.addf %180, %182 : vector<32x20xf32>
    %c0_227 = arith.constant 0 : index
    %c0_228 = arith.constant 0 : index
    %c0_229 = arith.constant 0 : index
    %184 = vector.load %arg8[%c0_227, %c0_228, %c0_229] : memref<1x32x20xf32, #tpu.memory_space<vmem>>, vector<1x32x20xf32>
    %185 = vector.shape_cast %184 : vector<1x32x20xf32> to vector<32x20xf32>
    %186 = vector.shape_cast %183 : vector<32x20xf32> to vector<1x32x20xf32>
    tpu.vector_store %arg8[%c0_227, %c0_228, %c0_229], %186 {strides = array<i32>} : memref<1x32x20xf32, #tpu.memory_space<vmem>>, vector<1x32x20xf32>,
    return
  }
  func.func @transform_0(%arg0: i32) -> (i32, i32, i32) {
    %c0_i32 = arith.constant 0 : i32
    %c0_i32_0 = arith.constant 0 : i32
    %c0_i32_1 = arith.constant 0 : i32
    return %arg0, %c0_i32, %c0_i32_0 : i32, i32, i32
  }
  func.func @transform_1(%arg0: i32) -> (i32, i32) {
    %c0_i32 = arith.constant 0 : i32
    %c0_i32_0 = arith.constant 0 : i32
    %c0_i32_1 = arith.constant 0 : i32
    return %c0_i32, %c0_i32_0 : i32, i32
  }
  func.func @transform_2(%arg0: i32) -> (i32, i32) {
    %c0_i32 = arith.constant 0 : i32
    %c0_i32_0 = arith.constant 0 : i32
    %c0_i32_1 = arith.constant 0 : i32
    return %c0_i32, %c0_i32_0 : i32, i32
  }
  func.func @transform_3(%arg0: i32) -> (i32, i32) {
    %c0_i32 = arith.constant 0 : i32
    %c0_i32_0 = arith.constant 0 : i32
    %c0_i32_1 = arith.constant 0 : i32
    return %c0_i32, %c0_i32_0 : i32, i32
  }
  func.func @transform_4(%arg0: i32) -> (i32, i32) {
    %c0_i32 = arith.constant 0 : i32
    %c0_i32_0 = arith.constant 0 : i32
    %c0_i32_1 = arith.constant 0 : i32
    return %c0_i32, %c0_i32_0 : i32, i32
  }
  func.func @transform_5(%arg0: i32) -> (i32, i32) {
    %c0_i32 = arith.constant 0 : i32
    %c0_i32_0 = arith.constant 0 : i32
    %c0_i32_1 = arith.constant 0 : i32
    return %c0_i32, %c0_i32_0 : i32, i32
  }
  func.func @transform_6(%arg0: i32) -> (i32, i32) {
    %c0_i32 = arith.constant 0 : i32
    %c0_i32_0 = arith.constant 0 : i32
    %c0_i32_1 = arith.constant 0 : i32
    return %c0_i32, %c0_i32_0 : i32, i32
  }
  func.func @transform_7(%arg0: i32) -> (i32, i32, i32) {
    %c0_i32 = arith.constant 0 : i32
    %c0_i32_0 = arith.constant 0 : i32
    %c0_i32_1 = arith.constant 0 : i32
    return %arg0, %c0_i32, %c0_i32_0 : i32, i32, i32
  }
}

</mosaic_0001>

<llo_original>
// kernel: conv_embedding_forward.1
$region0: #{conv_embedding_forward.1}
  #allocation0 [shape = 'u32[]', space=smem, size = 0x4, offset = 0x4, fixed_abs, tag = 'smem constant byte address 0x4 - core index']
  #allocation1 [shape = 'u32[144,128]{1,0:T(1,128)}', space=vmem, size = 0x12000, scoped, tag = 'internal scratch']
  #allocation2 [shape = 'bf16[36,80]{1,0:T(8,128)(2,1)}', space=vmem, size = 0x2800, scoped, tag = 'scratch operand']
  #allocation3 [shape = 'bf16[64,30]{1,0:T(16,128)(2,1)}', space=vmem, size = 0x4000, scoped, tag = 'scratch operand']
  #allocation4 [shape = 'bf16[144,20]{1,0:T(16,128)(2,1)}', space=vmem, size = 0x9000, scoped, tag = 'scratch operand']
  %s0 = inlined_call_operand.vmem [shape: bf16[2,64,30], index: 0, kind: input, shape index: {}]
  %s1 = inlined_call_operand.vmem [shape: bf16[16,36], index: 1, kind: input, shape index: {}]
  %s2 = inlined_call_operand.vmem [shape: bf16[32,144], index: 2, kind: input, shape index: {}]
  %s3 = inlined_call_operand.vmem [shape: f32[16,1], index: 3, kind: input, shape index: {}]
  %s4 = inlined_call_operand.vmem [shape: f32[16,1], index: 4, kind: input, shape index: {}]
  %s5 = inlined_call_operand.vmem [shape: f32[32,1], index: 5, kind: input, shape index: {}]
  %s6 = inlined_call_operand.vmem [shape: f32[32,1], index: 6, kind: input, shape index: {}]
  %s7 = inlined_call_operand.vmem [shape: f32[2,32,20], index: 7, kind: output, shape index: {}]
  %s8 = sld [smem:[#allocation0]]
  $region61: #{conv_embedding_forward.1} parent=0
    _
  %s10 = ssub.s32 1, %s8
  %s11 = scalar_select 0, %s10, %s8
  loop: start=0, step=1, limit=4
  $region2: #{conv_embedding_forward.1} parent=0 // loop_pre_header
    _
  $region3: #{conv_embedding_forward.1} parent=0 // loop_header
    %s13 = sphi 0, %s17
    %p14 = scmp.ge.s32.totalorder %s13, 4
    %s23 = sphi 0, %s25
    %s26 = sphi 0, %s23
    %s27 = sphi 0, %s26
    %s43 = sphi 0, %s27
    %s47 = sphi 0, %s47
    %s49 = sphi 0, %s47
    %s50 = sphi 0, %s49
    %s64 = sphi 0, %s50
    %s68 = sphi 0, %s68
    %s70 = sphi 0, %s68
    %s71 = sphi 0, %s70
    %s85 = sphi 0, %s71
    %s89 = sphi 0, %s89
    %s91 = sphi 0, %s89
    %s92 = sphi 0, %s91
    %s106 = sphi 0, %s92
    %s110 = sphi 0, %s110
    %s112 = sphi 0, %s110
    %s113 = sphi 0, %s112
    %s127 = sphi 0, %s113
    %s131 = sphi 0, %s131
    %s133 = sphi 0, %s131
    %s134 = sphi 0, %s133
    %s148 = sphi 0, %s134
    %s152 = sphi 0, %s152
    %s154 = sphi 0, %s152
    %s155 = sphi 0, %s154
    %s169 = sphi 0, %s155
    %s175 = sphi 0, %s177
    %s178 = sphi 0, %s175
    %s179 = sphi 0, %s178
    %s195 = sphi 0, %s179
  $region4: #{conv_embedding_forward.1} parent=0 // loop_header_branch
    %16 = sbr.rel (%p14) target = $region8
  $region5: #{conv_embedding_forward.1} parent=0 // loop_body
    %s18 = ssub.s32 %s13, 1
    %s19 = ssub.s32 %s13, 2
    %s20 = sadd.s32 %s13, 1
    %s21 = ssub.s32 %s13, %s20
    %p22 = scmp.eq.s32.totalorder %s21, 0
    %s24 = sadd.s32 %s23, 1
    %s25 = scalar_select %p22, %s23, %s24
    %p28 = pneg %p22
    %p29 = scmp.eq.s32.totalorder %s13, 1
    %p30 = por %p28, %p29
    %p31 = scmp.ne.s32.totalorder %s23, %s26
    %p32 = scmp.eq.s32.totalorder %s13, 0
    %p33 = por %p31, %p32
    %p34 = scmp.ne.s32.totalorder %s23, %s26
    %p35 = scmp.eq.s32.totalorder %s18, 1
    %p36 = por %p34, %p35
    %p37 = scmp.ne.s32.totalorder %s26, %s27
    %p38 = scmp.eq.s32.totalorder %s18, 0
    %p39 = por %p37, %p38
    %p40 = scmp.ne.s32.totalorder %s26, %s27
    %p41 = scmp.eq.s32.totalorder %s19, 1
    %p42 = por %p40, %p41
    %p44 = scmp.ne.s32.totalorder %s27, %s43
    %p45 = scmp.eq.s32.totalorder %s19, 0
    %p46 = por %p44, %p45
    %s48 = sadd.s32 %s47, 1
    %p51 = scmp.eq.s32.totalorder %s13, 1
    %p52 = scmp.ne.s32.totalorder %s47, %s49
    %p53 = scmp.eq.s32.totalorder %s13, 0
    %p54 = por %p52, %p53
    %p55 = scmp.ne.s32.totalorder %s47, %s49
    %p56 = scmp.eq.s32.totalorder %s18, 1
    %p57 = por %p55, %p56
    %p58 = scmp.ne.s32.totalorder %s49, %s50
    %p59 = scmp.eq.s32.totalorder %s18, 0
    %p60 = por %p58, %p59
    %p61 = scmp.ne.s32.totalorder %s49, %s50
    %p62 = scmp.eq.s32.totalorder %s19, 1
    %p63 = por %p61, %p62
    %p65 = scmp.ne.s32.totalorder %s50, %s64
    %p66 = scmp.eq.s32.totalorder %s19, 0
    %p67 = por %p65, %p66
    %s69 = sadd.s32 %s68, 1
    %p72 = scmp.eq.s32.totalorder %s13, 1
    %p73 = scmp.ne.s32.totalorder %s68, %s70
    %p74 = scmp.eq.s32.totalorder %s13, 0
    %p75 = por %p73, %p74
    %p76 = scmp.ne.s32.totalorder %s68, %s70
    %p77 = scmp.eq.s32.totalorder %s18, 1
    %p78 = por %p76, %p77
    %p79 = scmp.ne.s32.totalorder %s70, %s71
    %p80 = scmp.eq.s32.totalorder %s18, 0
    %p81 = por %p79, %p80
    %p82 = scmp.ne.s32.totalorder %s70, %s71
    %p83 = scmp.eq.s32.totalorder %s19, 1
    %p84 = por %p82, %p83
    %p86 = scmp.ne.s32.totalorder %s71, %s85
    %p87 = scmp.eq.s32.totalorder %s19, 0
    %p88 = por %p86, %p87
    %s90 = sadd.s32 %s89, 1
    %p93 = scmp.eq.s32.totalorder %s13, 1
    %p94 = scmp.ne.s32.totalorder %s89, %s91
    %p95 = scmp.eq.s32.totalorder %s13, 0
    %p96 = por %p94, %p95
    %p97 = scmp.ne.s32.totalorder %s89, %s91
    %p98 = scmp.eq.s32.totalorder %s18, 1
    %p99 = por %p97, %p98
    %p100 = scmp.ne.s32.totalorder %s91, %s92
    %p101 = scmp.eq.s32.totalorder %s18, 0
    %p102 = por %p100, %p101
    %p103 = scmp.ne.s32.totalorder %s91, %s92
    %p104 = scmp.eq.s32.totalorder %s19, 1
    %p105 = por %p103, %p104
    %p107 = scmp.ne.s32.totalorder %s92, %s106
    %p108 = scmp.eq.s32.totalorder %s19, 0
    %p109 = por %p107, %p108
    %s111 = sadd.s32 %s110, 1
    %p114 = scmp.eq.s32.totalorder %s13, 1
    %p115 = scmp.ne.s32.totalorder %s110, %s112
    %p116 = scmp.eq.s32.totalorder %s13, 0
    %p117 = por %p115, %p116
    %p118 = scmp.ne.s32.totalorder %s110, %s112
    %p119 = scmp.eq.s32.totalorder %s18, 1
    %p120 = por %p118, %p119
    %p121 = scmp.ne.s32.totalorder %s112, %s113
    %p122 = scmp.eq.s32.totalorder %s18, 0
    %p123 = por %p121, %p122
    %p124 = scmp.ne.s32.totalorder %s112, %s113
    %p125 = scmp.eq.s32.totalorder %s19, 1
    %p126 = por %p124, %p125
    %p128 = scmp.ne.s32.totalorder %s113, %s127
    %p129 = scmp.eq.s32.totalorder %s19, 0
    %p130 = por %p128, %p129
    %s132 = sadd.s32 %s131, 1
    %p135 = scmp.eq.s32.totalorder %s13, 1
    %p136 = scmp.ne.s32.totalorder %s131, %s133
    %p137 = scmp.eq.s32.totalorder %s13, 0
    %p138 = por %p136, %p137
    %p139 = scmp.ne.s32.totalorder %s131, %s133
    %p140 = scmp.eq.s32.totalorder %s18, 1
    %p141 = por %p139, %p140
    %p142 = scmp.ne.s32.totalorder %s133, %s134
    %p143 = scmp.eq.s32.totalorder %s18, 0
    %p144 = por %p142, %p143
    %p145 = scmp.ne.s32.totalorder %s133, %s134
    %p146 = scmp.eq.s32.totalorder %s19, 1
    %p147 = por %p145, %p146
    %p149 = scmp.ne.s32.totalorder %s134, %s148
    %p150 = scmp.eq.s32.totalorder %s19, 0
    %p151 = por %p149, %p150
    %s153 = sadd.s32 %s152, 1
    %p156 = scmp.eq.s32.totalorder %s13, 1
    %p157 = scmp.ne.s32.totalorder %s152, %s154
    %p158 = scmp.eq.s32.totalorder %s13, 0
    %p159 = por %p157, %p158
    %p160 = scmp.ne.s32.totalorder %s152, %s154
    %p161 = scmp.eq.s32.totalorder %s18, 1
    %p162 = por %p160, %p161
    %p163 = scmp.ne.s32.totalorder %s154, %s155
    %p164 = scmp.eq.s32.totalorder %s18, 0
    %p165 = por %p163, %p164
    %p166 = scmp.ne.s32.totalorder %s154, %s155
    %p167 = scmp.eq.s32.totalorder %s19, 1
    %p168 = por %p166, %p167
    %p170 = scmp.ne.s32.totalorder %s155, %s169
    %p171 = scmp.eq.s32.totalorder %s19, 0
    %p172 = por %p170, %p171
    %s173 = ssub.s32 %s13, %s20
    %p174 = scmp.eq.s32.totalorder %s173, 0
    %s176 = sadd.s32 %s175, 1
    %s177 = scalar_select %p174, %s175, %s176
    %p180 = pneg %p174
    %p181 = scmp.eq.s32.totalorder %s13, 1
    %p182 = por %p180, %p181
    %p183 = scmp.ne.s32.totalorder %s175, %s178
    %p184 = scmp.eq.s32.totalorder %s13, 0
    %p185 = por %p183, %p184
    %p186 = scmp.ne.s32.totalorder %s175, %s178
    %p187 = scmp.eq.s32.totalorder %s18, 1
    %p188 = por %p186, %p187
    %p189 = scmp.ne.s32.totalorder %s178, %s179
    %p190 = scmp.eq.s32.totalorder %s18, 0
    %p191 = por %p189, %p190
    %p192 = scmp.ne.s32.totalorder %s178, %s179
    %p193 = scmp.eq.s32.totalorder %s19, 1
    %p194 = por %p192, %p193
    %p196 = scmp.ne.s32.totalorder %s179, %s195
    %p197 = scmp.eq.s32.totalorder %s19, 0
    %p198 = por %p196, %p197
    %p199 = scmp.le.s32.totalorder 1, %s13
    %p200 = scmp.lt.s32.totalorder %s13, 3
    %p201 = pnand %p199, %p200
    %p202 = pneg %p201
    // Predicated region
    $region9: #{conv_embedding_forward.1} parent=5 // pred_check
      _
    $region10: #{conv_embedding_forward.1} parent=5 // pred_check_branch
      %204 = sbr.rel (%p201) target = $region12
    $region11: #{conv_embedding_forward.1} parent=5 // pred_region
      %s205 = ssub.s32 %s13, 1
      // Predicated region
      $region13: #{conv_embedding_forward.1} parent=11 // pred_check
        %p206 = pneg %p60
      $region14: #{conv_embedding_forward.1} parent=11 // pred_check_branch
        %208 = sbr.rel (%p206) target = $region16
      $region15: #{conv_embedding_forward.1} parent=11 // pred_region
        _
      $region16: #{conv_embedding_forward.1} parent=11 // pred_fallthru
        _
      // Predicated region
      $region17: #{conv_embedding_forward.1} parent=11 // pred_check
        %p209 = pneg %p81
      $region18: #{conv_embedding_forward.1} parent=11 // pred_check_branch
        %211 = sbr.rel (%p209) target = $region20
      $region19: #{conv_embedding_forward.1} parent=11 // pred_region
        _
      $region20: #{conv_embedding_forward.1} parent=11 // pred_fallthru
        _
      // Predicated region
      $region21: #{conv_embedding_forward.1} parent=11 // pred_check
        %p212 = pneg %p102
      $region22: #{conv_embedding_forward.1} parent=11 // pred_check_branch
        %214 = sbr.rel (%p212) target = $region24
      $region23: #{conv_embedding_forward.1} parent=11 // pred_region
        _
      $region24: #{conv_embedding_forward.1} parent=11 // pred_fallthru
        _
      // Predicated region
      $region25: #{conv_embedding_forward.1} parent=11 // pred_check
        %p215 = pneg %p123
      $region26: #{conv_embedding_forward.1} parent=11 // pred_check_branch
        %217 = sbr.rel (%p215) target = $region28
      $region27: #{conv_embedding_forward.1} parent=11 // pred_region
        _
      $region28: #{conv_embedding_forward.1} parent=11 // pred_fallthru
        _
      // Predicated region
      $region29: #{conv_embedding_forward.1} parent=11 // pred_check
        %p218 = pneg %p144
      $region30: #{conv_embedding_forward.1} parent=11 // pred_check_branch
        %220 = sbr.rel (%p218) target = $region32
      $region31: #{conv_embedding_forward.1} parent=11 // pred_region
        _
      $region32: #{conv_embedding_forward.1} parent=11 // pred_fallthru
        _
      // Predicated region
      $region33: #{conv_embedding_forward.1} parent=11 // pred_check
        %p221 = pneg %p165
      $region34: #{conv_embedding_forward.1} parent=11 // pred_check_branch
        %223 = sbr.rel (%p221) target = $region36
      $region35: #{conv_embedding_forward.1} parent=11 // pred_region
        _
      $region36: #{conv_embedding_forward.1} parent=11 // pred_fallthru
        _
    $region12: #{conv_embedding_forward.1} parent=5 // pred_fallthru
      _
    %p224 = scmp.lt.s32.totalorder %s13, 2
    // Predicated region
    $region37: #{conv_embedding_forward.1} parent=5 // pred_check
      %p225 = pneg %p224
    $region38: #{conv_embedding_forward.1} parent=5 // pred_check_branch
      %227 = sbr.rel (%p225) target = $region40
    $region39: #{conv_embedding_forward.1} parent=5 // pred_region
      // Predicated region
      $region41: #{conv_embedding_forward.1} parent=39 // pred_check
        %p228 = pneg %p33
      $region42: #{conv_embedding_forward.1} parent=39 // pred_check_branch
        %230 = sbr.rel (%p228) target = $region44
      $region43: #{conv_embedding_forward.1} parent=39 // pred_region
        %p231 = scmp.lt.s32.totalorder %s13, 1
        %s232 = scalar_select %p231, %s13, 1
        %s233 = smul.addr %s232, 8
        %s234 = smul.addr %s233, 4
        %s235 = scalar_lea.vmem %s0, %s234
      $region44: #{conv_embedding_forward.1} parent=39 // pred_fallthru
        _
    $region40: #{conv_embedding_forward.1} parent=5 // pred_fallthru
      _
    %p236 = scmp.le.s32.totalorder 1, %s13
    %p237 = scmp.lt.s32.totalorder %s13, 3
    %p238 = pnand %p236, %p237
    %p239 = pneg %p238
    // Predicated region
    $region45: #{conv_embedding_forward.1} parent=5 // pred_check
      _
    $region46: #{conv_embedding_forward.1} parent=5 // pred_check_branch
      %241 = sbr.rel (%p238) target = $region48
    $region47: #{conv_embedding_forward.1} parent=5 // pred_region
      %s242 = ssub.s32 %s13, 1
      %p243 = scmp.lt.s32.totalorder %s18, 1
      %s244 = scalar_select %p243, %s18, 1
      %s245 = smul.addr %s244, 8
      %s246 = smul.addr %s245, 4
      %s247 = scalar_lea.vmem %s0, %s246
      %p248 = pneg %p39
      %p249 = pneg %p36
      %p250 = pneg %p60
      %p251 = pneg %p57
      %p252 = pneg %p81
      %p253 = pneg %p78
      %p254 = pneg %p102
      %p255 = pneg %p99
      %p256 = pneg %p123
      %p257 = pneg %p120
      %p258 = pneg %p144
      %p259 = pneg %p141
      %p260 = pneg %p165
      %p261 = pneg %p162
      %p262 = pneg %p191
      %p263 = pneg %p188
      %p264 = scmp.lt.s32.totalorder %s18, 1
      %s265 = scalar_select %p264, %s18, 1
      %s266 = smul.addr %s265, 4
      %s267 = smul.addr %s266, 8
      %s268 = scalar_lea.vmem %s7, %s267
      %p269 = scmp.lt.s32.totalorder %s18, 1
      %s270 = scalar_select %p269, %s18, 1
      %s271 = smul.addr %s270, 8
      %s272 = smul.addr %s271, 4
      %s273 = scalar_lea.vmem %s0, %s272
      %p274 = scmp.lt.s32.totalorder %s18, 1
      %s275 = scalar_select %p274, %s18, 1
      %s276 = smul.addr %s275, 4
      %s277 = smul.addr %s276, 8
      %s278 = scalar_lea.vmem %s7, %s277
      %v280 = vld [vmem:[%s273] sm:$0x3]
      %vm281 = vcmask 156672
      %282 = vst.msk [vmem:[#allocation2] sm:$0x3] %vm281, %v280
      %v283 = vld [vmem:[%s273] sm:$0xc]
      %vm284 = vcmask 158722
      %285 = vst.msk [vmem:[#allocation2] sm:$0xc] %vm284, %v283
      %v286 = vld [vmem:[%s273 + $0x4] sm:$0x3]
      %287 = vst.msk [vmem:[#allocation2 + $0x4] sm:$0x3] %vm281, %v286
      %v288 = vld [vmem:[%s273 + $0x8] sm:$0x3]
      %v290 = vrot.slane %v288, 6
      %292 = vst.msk [vmem:[#allocation2 + $0x4] sm:$0xc] %vm284, %v290
      %v293 = vld [vmem:[%s273 + $0x8] sm:$0xc]
      %v295 = vrot.slane %v293, 6
      %v296 = vrot.slane %v295, 4
      %298 = vst.msk [vmem:[#allocation2 + $0x8] sm:$0x3] %vm281, %v296
      %v299 = vld [vmem:[%s273 + $0xc] sm:$0x3]
      %v301 = vrot.slane %v299, 6
      %303 = vst.msk [vmem:[#allocation2 + $0x8] sm:$0xc] %vm284, %v301
      %v304 = vld [vmem:[%s273 + $0x10] sm:$0x3]
      %305 = vst.msk [vmem:[#allocation2 + $0xc] sm:$0x3] %vm281, %v304
      %v306 = vld [vmem:[%s273 + $0x10] sm:$0xc]
      %307 = vst.msk [vmem:[#allocation2 + $0xc] sm:$0xc] %vm284, %v306
      %v308 = vld [vmem:[%s273 + $0x14] sm:$0x3]
      %309 = vst.msk [vmem:[#allocation2 + $0x10] sm:$0x3] %vm281, %v308
      %v310 = vld [vmem:[%s273 + $0x4] sm:$0x3]
      %312 = vrot.lane.b32.xlu0 %v310, 20
      %v313 = vpop.permute.xlu0 %312
      %vm315 = vcmask 320672
      %316 = vst.msk [vmem:[#allocation2] sm:$0x3] %vm315, %v313
      %v317 = vld [vmem:[%s273 + $0x4] sm:$0xc]
      %319 = vrot.lane.b32.xlu0 %v317, 20
      %v320 = vpop.permute.xlu0 %319
      %vm322 = vcmask 322722
      %323 = vst.msk [vmem:[#allocation2] sm:$0xc] %vm322, %v320
      %v324 = vld [vmem:[%s273] sm:$0x3]
      %326 = vrot.lane.b32.xlu0 %v324, 19
      %v327 = vpop.permute.xlu0 %326
      %329 = vst.msk [vmem:[#allocation2 + $0x4] sm:$0x3] %vm315, %v327
      %v330 = vld [vmem:[%s273 + $0xc] sm:$0x3]
      %v332 = vrot.slane %v330, 6
      %333 = vrot.lane.b32.xlu0 %v332, 20
      %v334 = vpop.permute.xlu0 %333
      %336 = vst.msk [vmem:[#allocation2 + $0x4] sm:$0xc] %vm322, %v334
      %v337 = vld [vmem:[%s273 + $0xc] sm:$0xc]
      %v339 = vrot.slane %v337, 6
      %v340 = vrot.slane %v339, 4
      %341 = vrot.lane.b32.xlu0 %v340, 20
      %v342 = vpop.permute.xlu0 %341
      %344 = vst.msk [vmem:[#allocation2 + $0x8] sm:$0x3] %vm315, %v342
      %v345 = vld [vmem:[%s273 + $0x8] sm:$0x3]
      %v347 = vrot.slane %v345, 6
      %348 = vrot.lane.b32.xlu0 %v347, 19
      %v349 = vpop.permute.xlu0 %348
      %351 = vst.msk [vmem:[#allocation2 + $0x8] sm:$0xc] %vm322, %v349
      %v352 = vld [vmem:[%s273 + $0x14] sm:$0x3]
      %354 = vrot.lane.b32.xlu0 %v352, 20
      %v355 = vpop.permute.xlu0 %354
      %357 = vst.msk [vmem:[#allocation2 + $0xc] sm:$0x3] %vm315, %v355
      %v358 = vld [vmem:[%s273 + $0x14] sm:$0xc]
      %360 = vrot.lane.b32.xlu0 %v358, 20
      %v361 = vpop.permute.xlu0 %360
      %363 = vst.msk [vmem:[#allocation2 + $0xc] sm:$0xc] %vm322, %v361
      %v364 = vld [vmem:[%s273 + $0x10] sm:$0x3]
      %366 = vrot.lane.b32.xlu0 %v364, 19
      %v367 = vpop.permute.xlu0 %366
      %369 = vst.msk [vmem:[#allocation2 + $0x10] sm:$0x3] %vm315, %v367
      %v370 = vld [vmem:[%s273 + $0x10] sm:$0x3]
      %372 = vrot.lane.b32.xlu0 %v370, 40
      %v373 = vpop.permute.xlu0 %372
      %vm375 = vcmask 484672
      %376 = vst.msk [vmem:[#allocation2] sm:$0x3] %vm375, %v373
      %v377 = vld [vmem:[%s273 + $0x10] sm:$0xc]
      %379 = vrot.lane.b32.xlu0 %v377, 40
      %v380 = vpop.permute.xlu0 %379
      %vm382 = vcmask 486722
      %383 = vst.msk [vmem:[#allocation2] sm:$0xc] %vm382, %v380
      %v384 = vld [vmem:[%s273 + $0x14] sm:$0x3]
      %386 = vrot.lane.b32.xlu0 %v384, 40
      %v387 = vpop.permute.xlu0 %386
      %389 = vst.msk [vmem:[#allocation2 + $0x4] sm:$0x3] %vm375, %v387
      %v390 = vld [vmem:[%s273 + $0x18] sm:$0x3]
      %v392 = vrot.slane %v390, 6
      %393 = vrot.lane.b32.xlu0 %v392, 40
      %v394 = vpop.permute.xlu0 %393
      %396 = vst.msk [vmem:[#allocation2 + $0x4] sm:$0xc] %vm382, %v394
      %v397 = vld [vmem:[%s273 + $0x18] sm:$0xc]
      %v399 = vrot.slane %v397, 6
      %v400 = vrot.slane %v399, 4
      %401 = vrot.lane.b32.xlu0 %v400, 40
      %v402 = vpop.permute.xlu0 %401
      %404 = vst.msk [vmem:[#allocation2 + $0x8] sm:$0x3] %vm375, %v402
      %v405 = vld [vmem:[%s273 + $0x1c] sm:$0x3]
      %v407 = vrot.slane %v405, 6
      %408 = vrot.lane.b32.xlu0 %v407, 40
      %v409 = vpop.permute.xlu0 %408
      %411 = vst.msk [vmem:[#allocation2 + $0x8] sm:$0xc] %vm382, %v409
      %v412 = vld [vmem:[%s273] sm:$0x3]
      %414 = vrot.lane.b32.xlu0 %v412, 35
      %v415 = vpop.permute.xlu0 %414
      %417 = vst.msk [vmem:[#allocation2 + $0xc] sm:$0x3] %vm375, %v415
      %v418 = vld [vmem:[%s273] sm:$0xc]
      %420 = vrot.lane.b32.xlu0 %v418, 35
      %v421 = vpop.permute.xlu0 %420
      %423 = vst.msk [vmem:[#allocation2 + $0xc] sm:$0xc] %vm382, %v421
      %v424 = vld [vmem:[%s273 + $0x4] sm:$0x3]
      %426 = vrot.lane.b32.xlu0 %v424, 35
      %v427 = vpop.permute.xlu0 %426
      %429 = vst.msk [vmem:[#allocation2 + $0x10] sm:$0x3] %vm375, %v427
      %v430 = vld [vmem:[%s273 + $0x14] sm:$0x3]
      %432 = vrot.lane.b32.xlu0 %v430, 60
      %v433 = vpop.permute.xlu0 %432
      %vm435 = vcmask 648672
      %436 = vst.msk [vmem:[#allocation2] sm:$0x3] %vm435, %v433
      %v437 = vld [vmem:[%s273 + $0x14] sm:$0xc]
      %439 = vrot.lane.b32.xlu0 %v437, 60
      %v440 = vpop.permute.xlu0 %439
      %vm442 = vcmask 650722
      %443 = vst.msk [vmem:[#allocation2] sm:$0xc] %vm442, %v440
      %v444 = vld [vmem:[%s273 + $0x10] sm:$0x3]
      %446 = vrot.lane.b32.xlu0 %v444, 59
      %v447 = vpop.permute.xlu0 %446
      %449 = vst.msk [vmem:[#allocation2 + $0x4] sm:$0x3] %vm435, %v447
      %v450 = vld [vmem:[%s273 + $0x1c] sm:$0x3]
      %v452 = vrot.slane %v450, 6
      %453 = vrot.lane.b32.xlu0 %v452, 60
      %v454 = vpop.permute.xlu0 %453
      %456 = vst.msk [vmem:[#allocation2 + $0x4] sm:$0xc] %vm442, %v454
      %v457 = vld [vmem:[%s273 + $0x1c] sm:$0xc]
      %v459 = vrot.slane %v457, 6
      %v460 = vrot.slane %v459, 4
      %461 = vrot.lane.b32.xlu0 %v460, 60
      %v462 = vpop.permute.xlu0 %461
      %464 = vst.msk [vmem:[#allocation2 + $0x8] sm:$0x3] %vm435, %v462
      %v465 = vld [vmem:[%s273 + $0x18] sm:$0x3]
      %v467 = vrot.slane %v465, 6
      %468 = vrot.lane.b32.xlu0 %v467, 59
      %v469 = vpop.permute.xlu0 %468
      %471 = vst.msk [vmem:[#allocation2 + $0x8] sm:$0xc] %vm442, %v469
      %v472 = vld [vmem:[%s273 + $0x4] sm:$0x3]
      %474 = vrot.lane.b32.xlu0 %v472, 55
      %v475 = vpop.permute.xlu0 %474
      %477 = vst.msk [vmem:[#allocation2 + $0xc] sm:$0x3] %vm435, %v475
      %v478 = vld [vmem:[%s273 + $0x4] sm:$0xc]
      %480 = vrot.lane.b32.xlu0 %v478, 55
      %v481 = vpop.permute.xlu0 %480
      %483 = vst.msk [vmem:[#allocation2 + $0xc] sm:$0xc] %vm442, %v481
      %v484 = vld [vmem:[%s273] sm:$0x3]
      %486 = vrot.lane.b32.xlu0 %v484, 54
      %v487 = vpop.permute.xlu0 %486
      %489 = vst.msk [vmem:[#allocation2 + $0x10] sm:$0x3] %vm435, %v487
      %v490 = vld [vmem:[%s1] sm:$0xf]
      %v491 = vld [vmem:[%s1 + $0x4] sm:$0xf]
      %v492 = vld [vmem:[#allocation2] sm:$0xf]
      %v493 = vld [vmem:[#allocation2 + $0x4] sm:$0xf]
      %v494 = vld [vmem:[#allocation2 + $0x8] sm:$0xf]
      %v495 = vld [vmem:[#allocation2 + $0xc] sm:$0xf]
      %v496 = vld [vmem:[#allocation2 + $0x10] sm:$0x3]
      %v499 = vunpack.c.l.b16 %v490
      %v500 = vunpack.c.l.b16 %v491
      %v501 = vpack.c.b16 %v500, %v499
      %v507 = vunpack.c.l.b16 %v492
      %v508 = vunpack.c.l.b16 %v493
      %v509 = vunpack.c.l.b16 %v494
      %v510 = vunpack.c.l.b16 %v495
      %v511 = vunpack.c.l.b16 %v496
      %v512 = vpack.c.b16 %v508, %v507
      %v513 = vpack.c.b16 %v510, %v509
      %v514 = vpack.c.b16 %v511, %v511
      %vm517 = vcmask 293888
      %v519 = vsel %vm517, %v501, 0
      %vm521 = vcmask 1041408
      %v523 = vsel %vm521, %v514, 0
      %525 = vmatprep.subr.bf16.mxu0 0
      %526 = vmatpush1.bf16.msra.mxu0 %v512
      %527 = vmatprep.subr.bf16.mxu0 0
      %528 = vmatpush1.bf16.msra.mxu0 %v513
      %529 = vmatprep.subr.bf16.mxu0 0
      %530 = vmatpush1.bf16.msra.mxu0 %v523
      %531 = vmatprep.subr.bf16.mxu0 0
      %532 = vmatpush1.bf16.msra.mxu0 0
      %533 = vmatprep.subr.bf16.mxu0 0
      %534 = vmatpush1.bf16.msra.mxu0 0
      %535 = vmatprep.subr.bf16.mxu0 0
      %536 = vmatpush1.bf16.msra.mxu0 0
      %537 = vmatprep.subr.bf16.mxu0 0
      %538 = vmatpush1.bf16.msra.mxu0 0
      %539 = vmatprep.subr.bf16.mxu0 0
      %540 = vmatpush1.bf16.msra.mxu0 0
      %541 = vmatprep.subr.bf16.mxu0 0
      %542 = vmatpush1.bf16.msra.mxu0 0
      %543 = vmatprep.subr.bf16.mxu0 0
      %544 = vmatpush1.bf16.msra.mxu0 0
      %545 = vmatprep.subr.bf16.mxu0 0
      %546 = vmatpush1.bf16.msra.mxu0 0
      %547 = vmatprep.subr.bf16.mxu0 0
      %548 = vmatpush1.bf16.msra.mxu0 0
      %549 = vmatprep.subr.bf16.mxu0 0
      %550 = vmatpush1.bf16.msra.mxu0 0
      %551 = vmatprep.subr.bf16.mxu0 0
      %552 = vmatpush1.bf16.msra.mxu0 0
      %553 = vmatprep.subr.bf16.mxu0 0
      %554 = vmatpush1.bf16.msra.mxu0 0
      %555 = vmatprep.subr.bf16.mxu0 0
      %556 = vmatpush1.bf16.msra.mxu0 0
      %557 = vmatprep.mubr.bf16.mxu0 0
      %558 = vmatmul.mubr.bf16.gmra.mrb[0].mxu0 %v519
      %v559 = vpop.f32.mrb[0].mxu0
      %v560 = vadd.f32 0.0, %v559
      %v561 = vpop.f32.mrb[0].mxu0
      %v562 = vpop.f32.mrb[0].mxu0
      %v563 = vadd.f32 0.0, %v562
      %v564 = vpop.f32.mrb[0].mxu0
      %565 = vdwg.mxu0
      %v566 = vld [vmem:[%s3] sm:$0xff]
      %v567 = vld [vmem:[%s3 + $0x8] sm:$0xff]
      %569 = vset.pattern.permute.xlu0 0
      %570 = vperm.xlu0 %569, %v566
      %v571 = vpop.permute.xlu0 %570
      %574 = vset.pattern.permute.xlu0 0
      %575 = vperm.xlu0 %574, %v567
      %v576 = vpop.permute.xlu0 %575
      %v578 = vmul.f32 %v560, %v571
      %v579 = vmul.f32 %v563, %v576
      %v580 = vld [vmem:[%s4] sm:$0xff]
      %v581 = vld [vmem:[%s4 + $0x8] sm:$0xff]
      %583 = vset.pattern.permute.xlu0 0
      %584 = vperm.xlu0 %583, %v580
      %v585 = vpop.permute.xlu0 %584
      %588 = vset.pattern.permute.xlu0 0
      %589 = vperm.xlu0 %588, %v581
      %v590 = vpop.permute.xlu0 %589
      %v592 = vadd.f32 %v578, %v585
      %v593 = vadd.f32 %v579, %v590
      %v594 = vmul.f32 %v592, 0.5
      %v595 = vmul.f32 %v593, 0.5
      %v596 = vmul.f32 %v592, 0.70710677
      %v597 = vmul.f32 %v593, 0.70710677
      %v598 = verf.f32.pop %v596
      %v599 = verf.f32.pop %v597
      %v600 = vadd.f32 %v598, 1.0
      %v601 = vadd.f32 %v599, 1.0
      %v602 = vmul.f32 %v594, %v600
      %v603 = vmul.f32 %v595, %v601
      %v604 = vlaneseq
      %v605 = vand.u32 %v604, 127
      %vm606 = vcmp.lt.s32.totalorder %v605, 0
      %v607 = vsub.s32 0, %v605
      %v608 = vsel %vm606, %v607, %v605
      %v609 = vmul.u32.u64.compose %v608, 3435973837
      %v610 = vextract.low.u32 %v609
      %v611 = vextract.high.u32 %v609
      %v612 = vshrl.u32 %v611, 2
      %v613 = vmul.u32 %v612, 5
      %v614 = vsub.s32 %v608, %v613
      %v615 = vsub.s32 0, %v614
      %v616 = vsel %vm606, %v615, %v614
      %vm617 = vcmp.ne.s32.totalorder %v616, 0
      %vm618 = vcmp.lt.s32.totalorder %v616, 0
      %vm619 = vmand %vm618, %vm617
      %v620 = vadd.s32 %v616, 5
      %v621 = vsel %vm619, %v620, %v616
      %vm622 = vcmp.eq.s32.totalorder %v621, 4
      %v623 = vsel %vm622, 0.0, %v602
      %v624 = vsel %vm622, 0.0, %v603
      %v625 = vpack.c.bf16 %v624, %v623
      %vm626 = vcmask 244736
      %627 = vst.msk [vmem:[#allocation3] sm:$0xff] %vm626, 0
      %628 = vst.msk [vmem:[#allocation3 + $0x8] sm:$0xff] %vm626, 0
      %629 = vst.msk [vmem:[#allocation3 + $0x10] sm:$0xff] %vm626, 0
      %630 = vst.msk [vmem:[#allocation3 + $0x18] sm:$0xff] %vm626, 0
      %vm631 = vcmask 162816
      %632 = vst.msk [vmem:[#allocation3 + $0x18] sm:$0xff] %vm631, %v625
      %634 = vrot.lane.b32.xlu0 %v625, 109
      %v635 = vpop.permute.xlu0 %634
      %vm637 = vcmask 171016
      %638 = vst.msk [vmem:[#allocation3 + $0x10] sm:$0xff] %vm637, %v635
      %639 = vrot.lane.b32.xlu0 %v625, 93
      %v640 = vpop.permute.xlu0 %639
      %vm642 = vcmask 203816
      %643 = vst.msk [vmem:[#allocation3 + $0x8] sm:$0xff] %vm642, %v640
      %644 = vrot.lane.b32.xlu0 %v625, 74
      %v645 = vpop.permute.xlu0 %644
      %vm647 = vcmask 212016
      %648 = vst.msk [vmem:[#allocation3] sm:$0xff] %vm647, %v645
      %v649 = vld [vmem:[#allocation3] sm:$0xff]
      %650 = vst.msk [vmem:[#allocation4] sm:$0xff] %vm631, %v649
      %v651 = vld [vmem:[#allocation3 + $0x8] sm:$0xff]
      %652 = vst.msk [vmem:[#allocation4 + $0x8] sm:$0xff] %vm631, %v651
      %v653 = vld [vmem:[#allocation3] sm:$0xff]
      %655 = vrot.lane.b32.xlu0 %v653, 127
      %v656 = vpop.permute.xlu0 %655
      %658 = vst.msk [vmem:[#allocation4 + $0x10] sm:$0xff] %vm631, %v656
      %v659 = vld [vmem:[#allocation3 + $0x10] sm:$0xff]
      %660 = vst.msk [vmem:[#allocation4 + $0x18] sm:$0xff] %vm631, %v659
      %v661 = vld [vmem:[#allocation3 + $0x18] sm:$0xff]
      %662 = vst.msk [vmem:[#allocation4 + $0x20] sm:$0xff] %vm631, %v661
      %v663 = vld [vmem:[#allocation3 + $0x10] sm:$0xff]
      %665 = vrot.lane.b32.xlu0 %v663, 127
      %v666 = vpop.permute.xlu0 %665
      %668 = vst.msk [vmem:[#allocation4 + $0x28] sm:$0xff] %vm631, %v666
      %v669 = vld [vmem:[#allocation3] sm:$0xff]
      %671 = vrot.lane.b32.xlu0 %v669, 123
      %v672 = vpop.permute.xlu0 %671
      %674 = vst.msk [vmem:[#allocation4 + $0x30] sm:$0xff] %vm631, %v672
      %v675 = vld [vmem:[#allocation3 + $0x8] sm:$0xff]
      %677 = vrot.lane.b32.xlu0 %v675, 123
      %v678 = vpop.permute.xlu0 %677
      %680 = vst.msk [vmem:[#allocation4 + $0x38] sm:$0xff] %vm631, %v678
      %v681 = vld [vmem:[#allocation3] sm:$0xff]
      %683 = vrot.lane.b32.xlu0 %v681, 122
      %v684 = vpop.permute.xlu0 %683
      %686 = vst.msk [vmem:[#allocation4 + $0x40] sm:$0xff] %vm631, %v684
      %v687 = vld [vmem:[%s2] sm:$0xff]
      %v688 = vld [vmem:[%s2 + $0x8] sm:$0xff]
      %v689 = vld [vmem:[%s2 + $0x10] sm:$0xff]
      %v690 = vld [vmem:[%s2 + $0x18] sm:$0xff]
      %v691 = vld [vmem:[#allocation4] sm:$0xff]
      %v692 = vld [vmem:[#allocation4 + $0x8] sm:$0xff]
      %v693 = vld [vmem:[#allocation4 + $0x10] sm:$0xff]
      %v694 = vld [vmem:[#allocation4 + $0x18] sm:$0xff]
      %v695 = vld [vmem:[#allocation4 + $0x20] sm:$0xff]
      %v696 = vld [vmem:[#allocation4 + $0x28] sm:$0xff]
      %v697 = vld [vmem:[#allocation4 + $0x30] sm:$0xff]
      %v698 = vld [vmem:[#allocation4 + $0x38] sm:$0xff]
      %v699 = vld [vmem:[#allocation4 + $0x40] sm:$0xff]
      %v704 = vunpack.c.l.b16 %v687
      %v705 = vunpack.c.h.b16 %v687
      %v706 = vunpack.c.l.b16 %v688
      %v707 = vunpack.c.h.b16 %v688
      %v708 = vunpack.c.l.b16 %v689
      %v709 = vunpack.c.h.b16 %v689
      %v710 = vunpack.c.l.b16 %v690
      %v711 = vunpack.c.h.b16 %v690
      %v712 = vpack.c.b16 %v706, %v704
      %v713 = vpack.c.b16 %v707, %v705
      %v714 = vpack.c.b16 %v710, %v708
      %v715 = vpack.c.b16 %v711, %v709
      %vm718 = vcmask 130048
      %v720 = vsel %vm718, %v713, 0
      %v723 = vsel %vm718, %v715, 0
      %725 = vmatprep.subr.bf16.mxu0 0
      %726 = vmatpush1.bf16.msra.mxu0 %v691
      %727 = vmatprep.subr.bf16.mxu0 0
      %728 = vmatpush1.bf16.msra.mxu0 %v692
      %729 = vmatprep.subr.bf16.mxu0 0
      %730 = vmatpush1.bf16.msra.mxu0 %v693
      %731 = vmatprep.subr.bf16.mxu0 0
      %732 = vmatpush1.bf16.msra.mxu0 %v694
      %733 = vmatprep.subr.bf16.mxu0 0
      %734 = vmatpush1.bf16.msra.mxu0 %v695
      %735 = vmatprep.subr.bf16.mxu0 0
      %736 = vmatpush1.bf16.msra.mxu0 %v696
      %737 = vmatprep.subr.bf16.mxu0 0
      %738 = vmatpush1.bf16.msra.mxu0 %v697
      %739 = vmatprep.subr.bf16.mxu0 0
      %740 = vmatpush1.bf16.msra.mxu0 %v698
      %741 = vmatprep.subr.bf16.mxu0 0
      %742 = vmatpush1.bf16.msra.mxu0 %v699
      %743 = vmatprep.subr.bf16.mxu0 0
      %744 = vmatpush1.bf16.msra.mxu0 0
      %745 = vmatprep.subr.bf16.mxu0 0
      %746 = vmatpush1.bf16.msra.mxu0 0
      %747 = vmatprep.subr.bf16.mxu0 0
      %748 = vmatpush1.bf16.msra.mxu0 0
      %749 = vmatprep.subr.bf16.mxu0 0
      %750 = vmatpush1.bf16.msra.mxu0 0
      %751 = vmatprep.subr.bf16.mxu0 0
      %752 = vmatpush1.bf16.msra.mxu0 0
      %753 = vmatprep.subr.bf16.mxu0 0
      %754 = vmatpush1.bf16.msra.mxu0 0
      %755 = vmatprep.subr.bf16.mxu0 0
      %756 = vmatpush1.bf16.msra.mxu0 0
      %757 = vmatprep.mubr.bf16.mxu0 %v720
      %758 = vmatmul.mubr.bf16.gmra.mrb[0].mxu0 %v712
      %v759 = vpop.f32.mrb[0].mxu0
      %v760 = vadd.f32 0.0, %v759
      %v761 = vpop.f32.mrb[0].mxu0
      %v762 = vpop.f32.mrb[0].mxu0
      %v763 = vadd.f32 0.0, %v762
      %v764 = vpop.f32.mrb[0].mxu0
      %765 = vmatprep.mubr.bf16.mxu0 %v723
      %766 = vmatmul.mubr.bf16.gmra.mrb[0].mxu0 %v714
      %v767 = vpop.f32.mrb[0].mxu0
      %v768 = vadd.f32 0.0, %v767
      %v769 = vpop.f32.mrb[0].mxu0
      %v770 = vpop.f32.mrb[0].mxu0
      %v771 = vadd.f32 0.0, %v770
      %v772 = vpop.f32.mrb[0].mxu0
      %773 = vdwg.mxu0
      %v774 = vld [vmem:[%s5] sm:$0xff]
      %v775 = vld [vmem:[%s5 + $0x8] sm:$0xff]
      %v776 = vld [vmem:[%s5 + $0x10] sm:$0xff]
      %v777 = vld [vmem:[%s5 + $0x18] sm:$0xff]
      %779 = vset.pattern.permute.xlu0 0
      %780 = vperm.xlu0 %779, %v774
      %v781 = vpop.permute.xlu0 %780
      %784 = vset.pattern.permute.xlu0 0
      %785 = vperm.xlu0 %784, %v775
      %v786 = vpop.permute.xlu0 %785
      %789 = vset.pattern.permute.xlu0 0
      %790 = vperm.xlu0 %789, %v776
      %v791 = vpop.permute.xlu0 %790
      %794 = vset.pattern.permute.xlu0 0
      %795 = vperm.xlu0 %794, %v777
      %v796 = vpop.permute.xlu0 %795
      %v798 = vmul.f32 %v760, %v781
      %v799 = vmul.f32 %v763, %v786
      %v800 = vmul.f32 %v768, %v791
      %v801 = vmul.f32 %v771, %v796
      %v802 = vld [vmem:[%s6] sm:$0xff]
      %v803 = vld [vmem:[%s6 + $0x8] sm:$0xff]
      %v804 = vld [vmem:[%s6 + $0x10] sm:$0xff]
      %v805 = vld [vmem:[%s6 + $0x18] sm:$0xff]
      %807 = vset.pattern.permute.xlu0 0
      %808 = vperm.xlu0 %807, %v802
      %v809 = vpop.permute.xlu0 %808
      %812 = vset.pattern.permute.xlu0 0
      %813 = vperm.xlu0 %812, %v803
      %v814 = vpop.permute.xlu0 %813
      %817 = vset.pattern.permute.xlu0 0
      %818 = vperm.xlu0 %817, %v804
      %v819 = vpop.permute.xlu0 %818
      %822 = vset.pattern.permute.xlu0 0
      %823 = vperm.xlu0 %822, %v805
      %v824 = vpop.permute.xlu0 %823
      %v826 = vadd.f32 %v798, %v809
      %v827 = vadd.f32 %v799, %v814
      %v828 = vadd.f32 %v800, %v819
      %v829 = vadd.f32 %v801, %v824
      %830 = vst.msk [vmem:[%s278] sm:$0xff] %vm631, %v826
      %831 = vst.msk [vmem:[%s278 + $0x8] sm:$0xff] %vm631, %v827
      %832 = vst.msk [vmem:[%s278 + $0x10] sm:$0xff] %vm631, %v828
      %833 = vst.msk [vmem:[%s278 + $0x18] sm:$0xff] %vm631, %v829
      %p834 = scmp.lt.s32.totalorder %s18, 1
      %s835 = scalar_select %p834, %s18, 1
      %s836 = smul.addr %s835, 4
      %s837 = smul.addr %s836, 8
      %s838 = scalar_lea.vmem %s7, %s837
      // Predicated region
      $region49: #{conv_embedding_forward.1} parent=47 // pred_check
        %p839 = pneg %p188
      $region50: #{conv_embedding_forward.1} parent=47 // pred_check_branch
        %841 = sbr.rel (%p839) target = $region52
      $region51: #{conv_embedding_forward.1} parent=47 // pred_region
        _
      $region52: #{conv_embedding_forward.1} parent=47 // pred_fallthru
        _
    $region48: #{conv_embedding_forward.1} parent=5 // pred_fallthru
      _
    %p842 = scmp.le.s32.totalorder 2, %s13
    // Predicated region
    $region53: #{conv_embedding_forward.1} parent=5 // pred_check
      %p843 = pneg %p842
    $region54: #{conv_embedding_forward.1} parent=5 // pred_check_branch
      %845 = sbr.rel (%p843) target = $region56
    $region55: #{conv_embedding_forward.1} parent=5 // pred_region
      %s846 = ssub.s32 %s13, 2
      // Predicated region
      $region57: #{conv_embedding_forward.1} parent=55 // pred_check
        %p847 = pneg %p194
      $region58: #{conv_embedding_forward.1} parent=55 // pred_check_branch
        %849 = sbr.rel (%p847) target = $region60
      $region59: #{conv_embedding_forward.1} parent=55 // pred_region
        %p850 = scmp.lt.s32.totalorder %s19, 1
        %s851 = scalar_select %p850, %s19, 1
        %s852 = smul.addr %s851, 4
        %s853 = smul.addr %s852, 8
        %s854 = scalar_lea.vmem %s7, %s853
      $region60: #{conv_embedding_forward.1} parent=55 // pred_fallthru
        _
    $region56: #{conv_embedding_forward.1} parent=5 // pred_fallthru
      _
  $region6: #{conv_embedding_forward.1} parent=0 // loop_footer
    %s17 = sadd.s32 1, %s13
  $region7: #{conv_embedding_forward.1} parent=0 // loop_footer_branch
    %12 = sbr.rel target = $region3
  $region8: #{conv_embedding_forward.1} parent=0 // loop_exit
    _

</llo_original>
